<compile_context>
chip_gen: v7x
topology: tpu7x:2x2x1
jax: 0.10.0
libtpu: 0.0.40
codegen_flags: <defaults>
</compile_context>

<pallas_src>
import functools

import jax
import jax.numpy as jnp
from jax.experimental import pallas as pl
from jax.experimental.pallas import tpu as pltpu


def _layernorm(x, w, b, eps=1e-5):
    mean = jnp.mean(x, axis=-1, keepdims=True)
    var = jnp.mean((x - mean) ** 2, axis=-1, keepdims=True)
    return (x - mean) * jax.lax.rsqrt(var + eps) * w + b


def bi_attn_kernel(
    v_ref, l_ref, mask_ref,
    ln_v_w, ln_v_b, ln_l_w, ln_l_b,
    w_v_fused, b_v_fused, w_l_fused, b_l_fused,
    out_v_w, out_v_b, out_l_w, out_l_b,
    gamma_v, gamma_l,
    v_out_ref, l_out_ref,
    q_s, k_s, vv_s, vl_s, ov_s, ol_s, ov_flat, ol_flat,
    *, num_heads, head_dim, embed_dim,
):
    f32 = jnp.float32
    bf16 = jnp.bfloat16
    E = embed_dim
    Hd = head_dim

    # One batch element per grid step.
    v = v_ref[0]                      # (T, Dv) f32
    l = l_ref[0]                      # (S, Dl) f32

    # LayerNorm in f32, cast to bf16 for the MXU matmuls.
    v_n = _layernorm(v, ln_v_w[...], ln_v_b[...])   # (T, Dv) f32
    l_n = _layernorm(l, ln_l_w[...], ln_l_b[...])   # (S, Dl) f32

    # Fused projections: one (T, 2E) and one (S, 2E) matmul (scale pre-folded
    # into the q half of w_v_fused / b_v_fused in the wrapper).
    qvv = (jnp.dot(v_n.astype(bf16), w_v_fused[...], preferred_element_type=f32)
           + b_v_fused[...]).astype(bf16)           # (T, 2E)  [q | value_v]
    kvl = (jnp.dot(l_n.astype(bf16), w_l_fused[...], preferred_element_type=f32)
           + b_l_fused[...]).astype(bf16)           # (S, 2E)  [k | value_l]

    # One-time relayout to head-major scratch (static lane slices, outside the
    # head loop) so the per-head select inside the loop is a leading-axis index.
    for hh in range(num_heads):
        o = hh * Hd
        q_s[hh] = qvv[:, o:o + Hd]
        vv_s[hh] = qvv[:, E + o:E + o + Hd]
        k_s[hh] = kvl[:, o:o + Hd]
        vl_s[hh] = kvl[:, E + o:E + o + Hd]

    # masked_fill semantics: keep the mask value where nonzero, -9e15 where zero.
    # Kept as (1, S); broadcast over T happens implicitly in the add (no
    # materialized (T, S) temporary).
    mask = mask_ref[0]                               # (1, S) f32
    add_mask = jnp.where(mask == 0.0, -9e15, mask)   # (1, S)

    dn_last = (((1,), (1,)), ((), ()))   # contract last dims: A @ B^T, no transposes

    @pl.loop(0, num_heads)
    def _head(h):
        qh = q_s[h]        # (T, Hd) bf16
        kh = k_s[h]        # (S, Hd) bf16

        # Single QK^T per head; both branches reuse it.
        aw = jax.lax.dot_general(qh, kh, dn_last, preferred_element_type=f32)  # (T, S)
        aw = jnp.clip(aw, -50000.0, 50000.0)

        # ---- vision branch: additive (1, S) mask, softmax over S (lanes).
        lg = aw + add_mask
        m_v = jnp.max(lg, axis=-1, keepdims=True)
        e_v = jnp.exp(lg - m_v)
        p_v = e_v * pl.reciprocal(jnp.sum(e_v, axis=-1, keepdims=True), approx=False)

        # ---- language branch: reuse the clipped scores via an XLU transpose
        #      (no second MXU matmul), softmax over T (lanes of the transpose).
        aw_t = jnp.swapaxes(aw, 0, 1)                # (S, T)
        m_l = jnp.max(aw_t, axis=-1, keepdims=True)
        e_l = jnp.exp(aw_t - m_l)                    # post-max clip dropped: bit-identical
        p_l = e_l * pl.reciprocal(jnp.sum(e_l, axis=-1, keepdims=True), approx=False)

        # ---- attention outputs (bf16 P x bf16 V, f32 accumulate), head-major store.
        ov_s[h] = jnp.dot(p_v.astype(bf16), vl_s[h], preferred_element_type=f32)  # (T, Hd)
        ol_s[h] = jnp.dot(p_l.astype(bf16), vv_s[h], preferred_element_type=f32)  # (S, Hd)

    # Stage per-head outputs lane-contiguously so the output projection runs as a
    # single full-depth (K = E) MXU matmul instead of H matmuls with K = head_dim.
    for hh in range(num_heads):
        o = hh * Hd
        ov_flat[:, o:o + Hd] = ov_s[hh]
        ol_flat[:, o:o + Hd] = ol_s[hh]

    delta_v = (jnp.dot(ov_flat[...].astype(bf16), out_v_w[...],
                       preferred_element_type=f32) + out_v_b[...])   # (T, Dv)
    delta_l = (jnp.dot(ol_flat[...].astype(bf16), out_l_w[...],
                       preferred_element_type=f32) + out_l_b[...])   # (S, Dl)

    # Residual on the LayerNormed activations (faithful to the PyTorch module,
    # which reassigns v = layer_norm_v(v) before v = v + gamma * delta).
    v_out_ref[0] = (v_n + gamma_v[...] * delta_v).astype(v_out_ref.dtype)
    l_out_ref[0] = (l_n + gamma_l[...] * delta_l).astype(l_out_ref.dtype)


def bi_attention_block(v, l, mask, p, num_heads):
    B, T, Dv = v.shape
    _, S, Dl = l.shape
    E = p["v_proj_w"].shape[1]
    Hd = E // num_heads
    scale = Hd ** -0.5
    mask3 = mask.reshape(B, 1, S)

    bf = lambda x: x.astype(jnp.bfloat16)

    # Fused projection weights [q | value] with the attention scale folded into
    # the q half (weight AND bias): (x @ W + b) * s == x @ (s*W) + s*b.
    w_v_fused = bf(jnp.concatenate([p["v_proj_w"] * scale, p["vv_proj_w"]], axis=1))
    b_v_fused = jnp.concatenate([p["v_proj_b"] * scale, p["vv_proj_b"]], axis=1)
    w_l_fused = bf(jnp.concatenate([p["l_proj_w"], p["vl_proj_w"]], axis=1))
    b_l_fused = jnp.concatenate([p["l_proj_b"], p["vl_proj_b"]], axis=1)

    kernel = functools.partial(bi_attn_kernel, num_heads=num_heads,
                               head_dim=Hd, embed_dim=E)

    def rep(shape):
        # Constant-index (replicated) parameter blocks: single-buffered — no
        # double-buffer VMEM cost and no per-grid-step pipeline bookkeeping.
        idx = (lambda b: (0, 0)) if len(shape) == 2 else (lambda b: (0, 0, 0))
        return pl.BlockSpec(shape, idx, pipeline_mode=pl.Buffered(1))

    in_specs = [
        pl.BlockSpec((1, T, Dv), lambda b: (b, 0, 0)),
        pl.BlockSpec((1, S, Dl), lambda b: (b, 0, 0)),
        pl.BlockSpec((1, 1, S), lambda b: (b, 0, 0)),
        rep((1, Dv)), rep((1, Dv)), rep((1, Dl)), rep((1, Dl)),
        rep((Dv, 2 * E)), rep((1, 2 * E)), rep((Dl, 2 * E)), rep((1, 2 * E)),
        rep((E, Dv)), rep((1, Dv)), rep((E, Dl)), rep((1, Dl)),
        rep((1, Dv)), rep((1, Dl)),
    ]
    out_specs = [
        pl.BlockSpec((1, T, Dv), lambda b: (b, 0, 0)),
        pl.BlockSpec((1, S, Dl), lambda b: (b, 0, 0)),
    ]
    out_shape = (
        jax.ShapeDtypeStruct((B, T, Dv), jnp.float32),
        jax.ShapeDtypeStruct((B, S, Dl), jnp.float32),
    )
    scratch_shapes = [
        pltpu.VMEM((num_heads, T, Hd), jnp.bfloat16),   # q      (head-major)
        pltpu.VMEM((num_heads, S, Hd), jnp.bfloat16),   # k
        pltpu.VMEM((num_heads, T, Hd), jnp.bfloat16),   # value_v
        pltpu.VMEM((num_heads, S, Hd), jnp.bfloat16),   # value_l
        pltpu.VMEM((num_heads, T, Hd), jnp.float32),    # attn out v (head-major)
        pltpu.VMEM((num_heads, S, Hd), jnp.float32),    # attn out l (head-major)
        pltpu.VMEM((T, E), jnp.float32),                # attn out v (lane-flat, K=E matmul)
        pltpu.VMEM((S, E), jnp.float32),                # attn out l (lane-flat, K=E matmul)
    ]

    return pl.pallas_call(
        kernel,
        out_shape=out_shape,
        grid_spec=pltpu.PrefetchScalarGridSpec(
            num_scalar_prefetch=0,
            grid=(B,),
            in_specs=in_specs,
            out_specs=out_specs,
            scratch_shapes=scratch_shapes,
        ),
        compiler_params=pltpu.CompilerParams(
            dimension_semantics=("parallel",),
            # Budgeted against v7x's 64 MiB physical VMEM (weights are single-
            # buffered; activations double-buffered); plenty at these shapes.
            vmem_limit_bytes=32 * 1024 * 1024,
        ),
    )(
        v, l, mask3,
        p["ln_v_w"], p["ln_v_b"], p["ln_l_w"], p["ln_l_b"],
        w_v_fused, b_v_fused, w_l_fused, b_l_fused,
        bf(p["out_v_w"]), p["out_v_b"], bf(p["out_l_w"]), p["out_l_b"],
        p["gamma_v"], p["gamma_l"],
    )


def make_params(key, v_dim, l_dim, embed_dim, init_values=1e-4):
    ks = jax.random.split(key, 6)

    def xavier(k, fan_in, fan_out):
        bound = (6.0 / (fan_in + fan_out)) ** 0.5
        # stored as (in, out) so that y = x @ W + b
        return jax.random.uniform(k, (fan_in, fan_out), jnp.float32, -bound, bound)

    return dict(
        ln_v_w=jnp.ones((1, v_dim), jnp.float32), ln_v_b=jnp.zeros((1, v_dim), jnp.float32),
        ln_l_w=jnp.ones((1, l_dim), jnp.float32), ln_l_b=jnp.zeros((1, l_dim), jnp.float32),
        v_proj_w=xavier(ks[0], v_dim, embed_dim), v_proj_b=jnp.zeros((1, embed_dim), jnp.float32),
        l_proj_w=xavier(ks[1], l_dim, embed_dim), l_proj_b=jnp.zeros((1, embed_dim), jnp.float32),
        vv_proj_w=xavier(ks[2], v_dim, embed_dim), vv_proj_b=jnp.zeros((1, embed_dim), jnp.float32),
        vl_proj_w=xavier(ks[3], l_dim, embed_dim), vl_proj_b=jnp.zeros((1, embed_dim), jnp.float32),
        out_v_w=xavier(ks[4], embed_dim, v_dim), out_v_b=jnp.zeros((1, v_dim), jnp.float32),
        out_l_w=xavier(ks[5], embed_dim, l_dim), out_l_b=jnp.zeros((1, l_dim), jnp.float32),
        gamma_v=init_values * jnp.ones((1, v_dim), jnp.float32),
        gamma_l=init_values * jnp.ones((1, l_dim), jnp.float32),
    )


def reference(v, l, mask, p, num_heads):
    """Pure-JAX f32 mirror of the PyTorch forward (eval mode)."""
    B, T, Dv = v.shape
    _, S, Dl = l.shape
    E = p["v_proj_w"].shape[1]
    Hd = E // num_heads

    def ln(x, w, b):
        m = x.mean(-1, keepdims=True)
        var = ((x - m) ** 2).mean(-1, keepdims=True)
        return (x - m) / jnp.sqrt(var + 1e-5) * w + b

    vn = ln(v, p["ln_v_w"][0], p["ln_v_b"][0])
    lnl = ln(l, p["ln_l_w"][0], p["ln_l_b"][0])
    scale = Hd ** -0.5
    q = (vn @ p["v_proj_w"] + p["v_proj_b"][0]) * scale
    k = lnl @ p["l_proj_w"] + p["l_proj_b"][0]
    vv = vn @ p["vv_proj_w"] + p["vv_proj_b"][0]
    vl = lnl @ p["vl_proj_w"] + p["vl_proj_b"][0]

    def heads(x, L):
        return x.reshape(B, L, num_heads, Hd).transpose(0, 2, 1, 3)

    qh, kh = heads(q, T), heads(k, S)
    vvh, vlh = heads(vv, T), heads(vl, S)

    aw = jnp.einsum("bhtd,bhsd->bhts", qh, kh)
    aw = jnp.clip(aw, -50000.0, 50000.0)

    awt = aw.transpose(0, 1, 3, 2)
    awt = awt - awt.max(-1, keepdims=True)
    awt = jnp.clip(awt, -50000.0, 50000.0)
    p_l = jax.nn.softmax(awt, axis=-1)

    addm = jnp.where(mask[:, None, None, :] == 0, -9e15, mask[:, None, None, :])
    p_v = jax.nn.softmax(aw + addm, axis=-1)

    ov = jnp.einsum("bhts,bhsd->bhtd", p_v, vlh).transpose(0, 2, 1, 3).reshape(B, T, E)
    ol = jnp.einsum("bhst,bhtd->bhsd", p_l, vvh).transpose(0, 2, 1, 3).reshape(B, S, E)

    dv = ov @ p["out_v_w"] + p["out_v_b"][0]
    dl = ol @ p["out_l_w"] + p["out_l_b"][0]
    return vn + p["gamma_v"][0] * dv, lnl + p["gamma_l"][0] * dl


if __name__ == "__main__":
    B, T, S = 2, 16, 8
    v_dim, l_dim, embed_dim, num_heads = 32, 32, 32, 4

    key = jax.random.PRNGKey(0)
    k_v, k_l, k_m, k_p = jax.random.split(key, 4)

    v = jax.random.normal(k_v, (B, T, v_dim), jnp.float32)
    l = jax.random.normal(k_l, (B, S, l_dim), jnp.float32)
    mask = (jax.random.uniform(k_m, (B, S)) > 0.3).astype(jnp.float32)
    mask = mask.at[:, 0].set(1.0)  # ensure at least one valid language token per row

    params = make_params(k_p, v_dim, l_dim, embed_dim)

    v_out, l_out = bi_attention_block(v, l, mask, params, num_heads)
    jax.block_until_ready((v_out, l_out))

    v_ref, l_ref = reference(v, l, mask, params, num_heads)
    assert v_out.shape == (B, T, v_dim) and l_out.shape == (B, S, l_dim)
    # gamma = 1e-4 scales the (bf16-matmul) attention delta, so f32-reference
    # agreement is tight even with bf16 operands.
    assert jnp.allclose(v_out, v_ref, atol=1e-3, rtol=1e-3)
    assert jnp.allclose(l_out, l_ref, atol=1e-3, rtol=1e-3)

    print("KERNEL_OK")
</pallas_src>

<mosaic_0001>
module attributes {stable_mosaic.version = 11 : i64} {
  func.func @bi_attn_kernel(%arg0: i32, %arg1: memref<1x16x32xf32, #tpu.memory_space<vmem>>, %arg2: memref<1x8x32xf32, #tpu.memory_space<vmem>>, %arg3: memref<1x1x8xf32, #tpu.memory_space<vmem>>, %arg4: memref<1x32xf32, #tpu.memory_space<vmem>>, %arg5: memref<1x32xf32, #tpu.memory_space<vmem>>, %arg6: memref<1x32xf32, #tpu.memory_space<vmem>>, %arg7: memref<1x32xf32, #tpu.memory_space<vmem>>, %arg8: memref<32x64xbf16, #tpu.memory_space<vmem>>, %arg9: memref<1x64xf32, #tpu.memory_space<vmem>>, %arg10: memref<32x64xbf16, #tpu.memory_space<vmem>>, %arg11: memref<1x64xf32, #tpu.memory_space<vmem>>, %arg12: memref<32x32xbf16, #tpu.memory_space<vmem>>, %arg13: memref<1x32xf32, #tpu.memory_space<vmem>>, %arg14: memref<32x32xbf16, #tpu.memory_space<vmem>>, %arg15: memref<1x32xf32, #tpu.memory_space<vmem>>, %arg16: memref<1x32xf32, #tpu.memory_space<vmem>>, %arg17: memref<1x32xf32, #tpu.memory_space<vmem>>, %arg18: memref<1x16x32xf32, #tpu.memory_space<vmem>>, %arg19: memref<1x8x32xf32, #tpu.memory_space<vmem>>, %arg20: memref<4x16x8xbf16, #tpu.memory_space<vmem>>, %arg21: memref<4x8x8xbf16, #tpu.memory_space<vmem>>, %arg22: memref<4x16x8xbf16, #tpu.memory_space<vmem>>, %arg23: memref<4x8x8xbf16, #tpu.memory_space<vmem>>, %arg24: memref<4x16x8xf32, #tpu.memory_space<vmem>>, %arg25: memref<4x8x8xf32, #tpu.memory_space<vmem>>, %arg26: memref<16x32xf32, #tpu.memory_space<vmem>>, %arg27: memref<8x32xf32, #tpu.memory_space<vmem>>) attributes {dimension_semantics = [#tpu.dimension_semantics<parallel>], iteration_bounds = array<i64: 2>, scalar_prefetch = 0 : i64, scratch_operands = 8 : i64, tpu.core_type = #tpu.core_type<tc>, window_params = [{transform_indices = @transform_0, window_bounds = array<i64: 1, 16, 32>}, {transform_indices = @transform_1, window_bounds = array<i64: 1, 8, 32>}, {transform_indices = @transform_2, window_bounds = array<i64: 1, 1, 8>}, {pipeline_mode = #tpu.pipeline_mode<synchronous>, transform_indices = @transform_3, window_bounds = array<i64: 1, 32>}, {pipeline_mode = #tpu.pipeline_mode<synchronous>, transform_indices = @transform_4, window_bounds = array<i64: 1, 32>}, {pipeline_mode = #tpu.pipeline_mode<synchronous>, transform_indices = @transform_5, window_bounds = array<i64: 1, 32>}, {pipeline_mode = #tpu.pipeline_mode<synchronous>, transform_indices = @transform_6, window_bounds = array<i64: 1, 32>}, {pipeline_mode = #tpu.pipeline_mode<synchronous>, transform_indices = @transform_7, window_bounds = array<i64: 32, 64>}, {pipeline_mode = #tpu.pipeline_mode<synchronous>, transform_indices = @transform_8, window_bounds = array<i64: 1, 64>}, {pipeline_mode = #tpu.pipeline_mode<synchronous>, transform_indices = @transform_9, window_bounds = array<i64: 32, 64>}, {pipeline_mode = #tpu.pipeline_mode<synchronous>, transform_indices = @transform_10, window_bounds = array<i64: 1, 64>}, {pipeline_mode = #tpu.pipeline_mode<synchronous>, transform_indices = @transform_11, window_bounds = array<i64: 32, 32>}, {pipeline_mode = #tpu.pipeline_mode<synchronous>, transform_indices = @transform_12, window_bounds = array<i64: 1, 32>}, {pipeline_mode = #tpu.pipeline_mode<synchronous>, transform_indices = @transform_13, window_bounds = array<i64: 32, 32>}, {pipeline_mode = #tpu.pipeline_mode<synchronous>, transform_indices = @transform_14, window_bounds = array<i64: 1, 32>}, {pipeline_mode = #tpu.pipeline_mode<synchronous>, transform_indices = @transform_15, window_bounds = array<i64: 1, 32>}, {pipeline_mode = #tpu.pipeline_mode<synchronous>, transform_indices = @transform_16, window_bounds = array<i64: 1, 32>}, {transform_indices = @transform_17, window_bounds = array<i64: 1, 16, 32>}, {transform_indices = @transform_18, window_bounds = array<i64: 1, 8, 32>}]} {
    %c0 = arith.constant 0 : index
    %c0_0 = arith.constant 0 : index
    %c0_1 = arith.constant 0 : index
    %0 = vector.load %arg1[%c0, %c0_0, %c0_1] : memref<1x16x32xf32, #tpu.memory_space<vmem>>, vector<1x16x32xf32>
    %1 = vector.shape_cast %0 : vector<1x16x32xf32> to vector<16x32xf32>
    %c0_2 = arith.constant 0 : index
    %c0_3 = arith.constant 0 : index
    %c0_4 = arith.constant 0 : index
    %2 = vector.load %arg2[%c0_2, %c0_3, %c0_4] : memref<1x8x32xf32, #tpu.memory_space<vmem>>, vector<1x8x32xf32>
    %3 = vector.shape_cast %2 : vector<1x8x32xf32> to vector<8x32xf32>
    %c0_5 = arith.constant 0 : index
    %c0_6 = arith.constant 0 : index
    %4 = vector.load %arg4[%c0_5, %c0_6] : memref<1x32xf32, #tpu.memory_space<vmem>>, vector<1x32xf32>
    %c0_7 = arith.constant 0 : index
    %c0_8 = arith.constant 0 : index
    %5 = vector.load %arg5[%c0_7, %c0_8] : memref<1x32xf32, #tpu.memory_space<vmem>>, vector<1x32xf32>
    %cst = arith.constant dense<0.000000e+00> : vector<16xf32>
    %6 = vector.multi_reduction <add>, %1, %cst [1] : vector<16x32xf32> to vector<16xf32>
    %7 = vector.shape_cast %6 : vector<16xf32> to vector<16x1xf32>
    %cst_9 = arith.constant 3.200000e+01 : f32
    %8 = vector.broadcast %cst_9 : f32 to vector<16x1xf32>
    %9 = arith.divf %7, %8 : vector<16x1xf32>
    %10 = vector.broadcast %9 : vector<16x1xf32> to vector<16x32xf32>
    %11 = arith.subf %1, %10 : vector<16x32xf32>
    %12 = arith.mulf %11, %11 : vector<16x32xf32>
    %cst_10 = arith.constant dense<0.000000e+00> : vector<16xf32>
    %13 = vector.multi_reduction <add>, %12, %cst_10 [1] : vector<16x32xf32> to vector<16xf32>
    %14 = vector.shape_cast %13 : vector<16xf32> to vector<16x1xf32>
    %cst_11 = arith.constant 3.200000e+01 : f32
    %15 = vector.broadcast %cst_11 : f32 to vector<16x1xf32>
    %16 = arith.divf %14, %15 : vector<16x1xf32>
    %17 = vector.broadcast %9 : vector<16x1xf32> to vector<16x32xf32>
    %18 = arith.subf %1, %17 : vector<16x32xf32>
    %cst_12 = arith.constant 9.99999974E-6 : f32
    %19 = vector.broadcast %cst_12 : f32 to vector<16x1xf32>
    %20 = arith.addf %16, %19 : vector<16x1xf32>
    %21 = math.rsqrt %20 : vector<16x1xf32>
    %22 = vector.broadcast %21 : vector<16x1xf32> to vector<16x32xf32>
    %23 = arith.mulf %18, %22 : vector<16x32xf32>
    %24 = vector.broadcast %4 : vector<1x32xf32> to vector<16x32xf32>
    %25 = arith.mulf %23, %24 : vector<16x32xf32>
    %26 = vector.broadcast %5 : vector<1x32xf32> to vector<16x32xf32>
    %27 = arith.addf %25, %26 : vector<16x32xf32>
    %c0_13 = arith.constant 0 : index
    %c0_14 = arith.constant 0 : index
    %28 = vector.load %arg6[%c0_13, %c0_14] : memref<1x32xf32, #tpu.memory_space<vmem>>, vector<1x32xf32>
    %c0_15 = arith.constant 0 : index
    %c0_16 = arith.constant 0 : index
    %29 = vector.load %arg7[%c0_15, %c0_16] : memref<1x32xf32, #tpu.memory_space<vmem>>, vector<1x32xf32>
    %cst_17 = arith.constant dense<0.000000e+00> : vector<8xf32>
    %30 = vector.multi_reduction <add>, %3, %cst_17 [1] : vector<8x32xf32> to vector<8xf32>
    %31 = vector.shape_cast %30 : vector<8xf32> to vector<8x1xf32>
    %cst_18 = arith.constant 3.200000e+01 : f32
    %32 = vector.broadcast %cst_18 : f32 to vector<8x1xf32>
    %33 = arith.divf %31, %32 : vector<8x1xf32>
    %34 = vector.broadcast %33 : vector<8x1xf32> to vector<8x32xf32>
    %35 = arith.subf %3, %34 : vector<8x32xf32>
    %36 = arith.mulf %35, %35 : vector<8x32xf32>
    %cst_19 = arith.constant dense<0.000000e+00> : vector<8xf32>
    %37 = vector.multi_reduction <add>, %36, %cst_19 [1] : vector<8x32xf32> to vector<8xf32>
    %38 = vector.shape_cast %37 : vector<8xf32> to vector<8x1xf32>
    %cst_20 = arith.constant 3.200000e+01 : f32
    %39 = vector.broadcast %cst_20 : f32 to vector<8x1xf32>
    %40 = arith.divf %38, %39 : vector<8x1xf32>
    %41 = vector.broadcast %33 : vector<8x1xf32> to vector<8x32xf32>
    %42 = arith.subf %3, %41 : vector<8x32xf32>
    %cst_21 = arith.constant 9.99999974E-6 : f32
    %43 = vector.broadcast %cst_21 : f32 to vector<8x1xf32>
    %44 = arith.addf %40, %43 : vector<8x1xf32>
    %45 = math.rsqrt %44 : vector<8x1xf32>
    %46 = vector.broadcast %45 : vector<8x1xf32> to vector<8x32xf32>
    %47 = arith.mulf %42, %46 : vector<8x32xf32>
    %48 = vector.broadcast %28 : vector<1x32xf32> to vector<8x32xf32>
    %49 = arith.mulf %47, %48 : vector<8x32xf32>
    %50 = vector.broadcast %29 : vector<1x32xf32> to vector<8x32xf32>
    %51 = arith.addf %49, %50 : vector<8x32xf32>
    %52 = arith.truncf %27 : vector<16x32xf32> to vector<16x32xbf16>
    %c0_22 = arith.constant 0 : index
    %c0_23 = arith.constant 0 : index
    %53 = vector.load %arg8[%c0_22, %c0_23] : memref<32x64xbf16, #tpu.memory_space<vmem>>, vector<32x64xbf16>
    %cst_24 = arith.constant dense<0.000000e+00> : vector<16x64xf32>
    %54 = tpu.matmul %52, %53, %cst_24 {dimension_numbers = #tpu.dot_dimension_numbers<[1], [0], [0], [1], [0, 0, 1, 1], [], []>} : vector<16x32xbf16>, vector<32x64xbf16>, vector<16x64xf32> -> vector<16x64xf32>
    %c0_25 = arith.constant 0 : index
    %c0_26 = arith.constant 0 : index
    %55 = vector.load %arg9[%c0_25, %c0_26] : memref<1x64xf32, #tpu.memory_space<vmem>>, vector<1x64xf32>
    %56 = vector.broadcast %55 : vector<1x64xf32> to vector<16x64xf32>
    %57 = arith.addf %54, %56 : vector<16x64xf32>
    %58 = arith.truncf %57 : vector<16x64xf32> to vector<16x64xbf16>
    %59 = arith.truncf %51 : vector<8x32xf32> to vector<8x32xbf16>
    %c0_27 = arith.constant 0 : index
    %c0_28 = arith.constant 0 : index
    %60 = vector.load %arg10[%c0_27, %c0_28] : memref<32x64xbf16, #tpu.memory_space<vmem>>, vector<32x64xbf16>
    %cst_29 = arith.constant dense<0.000000e+00> : vector<8x64xf32>
    %61 = tpu.matmul %59, %60, %cst_29 {dimension_numbers = #tpu.dot_dimension_numbers<[1], [0], [0], [1], [0, 0, 1, 1], [], []>} : vector<8x32xbf16>, vector<32x64xbf16>, vector<8x64xf32> -> vector<8x64xf32>
    %c0_30 = arith.constant 0 : index
    %c0_31 = arith.constant 0 : index
    %62 = vector.load %arg11[%c0_30, %c0_31] : memref<1x64xf32, #tpu.memory_space<vmem>>, vector<1x64xf32>
    %63 = vector.broadcast %62 : vector<1x64xf32> to vector<8x64xf32>
    %64 = arith.addf %61, %63 : vector<8x64xf32>
    %65 = arith.truncf %64 : vector<8x64xf32> to vector<8x64xbf16>
    %66 = vector.extract_strided_slice %58 {offsets = [0, 0], sizes = [16, 8], strides = [1, 1]} : vector<16x64xbf16> to vector<16x8xbf16>
    %c0_32 = arith.constant 0 : index
    %c0_33 = arith.constant 0 : index
    %c0_34 = arith.constant 0 : index
    %67 = vector.load %arg20[%c0_32, %c0_33, %c0_34] : memref<4x16x8xbf16, #tpu.memory_space<vmem>>, vector<1x16x8xbf16>
    %68 = vector.shape_cast %67 : vector<1x16x8xbf16> to vector<16x8xbf16>
    %69 = vector.shape_cast %66 : vector<16x8xbf16> to vector<1x16x8xbf16>
    tpu.vector_store %arg20[%c0_32, %c0_33, %c0_34], %69 {strides = array<i32>} : memref<4x16x8xbf16, #tpu.memory_space<vmem>>, vector<1x16x8xbf16>,
    %70 = vector.extract_strided_slice %58 {offsets = [0, 32], sizes = [16, 8], strides = [1, 1]} : vector<16x64xbf16> to vector<16x8xbf16>
    %c0_35 = arith.constant 0 : index
    %c0_36 = arith.constant 0 : index
    %c0_37 = arith.constant 0 : index
    %71 = vector.load %arg22[%c0_35, %c0_36, %c0_37] : memref<4x16x8xbf16, #tpu.memory_space<vmem>>, vector<1x16x8xbf16>
    %72 = vector.shape_cast %71 : vector<1x16x8xbf16> to vector<16x8xbf16>
    %73 = vector.shape_cast %70 : vector<16x8xbf16> to vector<1x16x8xbf16>
    tpu.vector_store %arg22[%c0_35, %c0_36, %c0_37], %73 {strides = array<i32>} : memref<4x16x8xbf16, #tpu.memory_space<vmem>>, vector<1x16x8xbf16>,
    %74 = vector.extract_strided_slice %65 {offsets = [0, 0], sizes = [8, 8], strides = [1, 1]} : vector<8x64xbf16> to vector<8x8xbf16>
    %c0_38 = arith.constant 0 : index
    %c0_39 = arith.constant 0 : index
    %c0_40 = arith.constant 0 : index
    %75 = vector.load %arg21[%c0_38, %c0_39, %c0_40] : memref<4x8x8xbf16, #tpu.memory_space<vmem>>, vector<1x8x8xbf16>
    %76 = vector.shape_cast %75 : vector<1x8x8xbf16> to vector<8x8xbf16>
    %77 = vector.shape_cast %74 : vector<8x8xbf16> to vector<1x8x8xbf16>
    tpu.vector_store %arg21[%c0_38, %c0_39, %c0_40], %77 {strides = array<i32>} : memref<4x8x8xbf16, #tpu.memory_space<vmem>>, vector<1x8x8xbf16>,
    %78 = vector.extract_strided_slice %65 {offsets = [0, 32], sizes = [8, 8], strides = [1, 1]} : vector<8x64xbf16> to vector<8x8xbf16>
    %c0_41 = arith.constant 0 : index
    %c0_42 = arith.constant 0 : index
    %c0_43 = arith.constant 0 : index
    %79 = vector.load %arg23[%c0_41, %c0_42, %c0_43] : memref<4x8x8xbf16, #tpu.memory_space<vmem>>, vector<1x8x8xbf16>
    %80 = vector.shape_cast %79 : vector<1x8x8xbf16> to vector<8x8xbf16>
    %81 = vector.shape_cast %78 : vector<8x8xbf16> to vector<1x8x8xbf16>
    tpu.vector_store %arg23[%c0_41, %c0_42, %c0_43], %81 {strides = array<i32>} : memref<4x8x8xbf16, #tpu.memory_space<vmem>>, vector<1x8x8xbf16>,
    %82 = vector.extract_strided_slice %58 {offsets = [0, 8], sizes = [16, 8], strides = [1, 1]} : vector<16x64xbf16> to vector<16x8xbf16>
    %c1 = arith.constant 1 : index
    %c0_44 = arith.constant 0 : index
    %c0_45 = arith.constant 0 : index
    %83 = vector.load %arg20[%c1, %c0_44, %c0_45] : memref<4x16x8xbf16, #tpu.memory_space<vmem>>, vector<1x16x8xbf16>
    %84 = vector.shape_cast %83 : vector<1x16x8xbf16> to vector<16x8xbf16>
    %85 = vector.shape_cast %82 : vector<16x8xbf16> to vector<1x16x8xbf16>
    tpu.vector_store %arg20[%c1, %c0_44, %c0_45], %85 {strides = array<i32>} : memref<4x16x8xbf16, #tpu.memory_space<vmem>>, vector<1x16x8xbf16>,
    %86 = vector.extract_strided_slice %58 {offsets = [0, 40], sizes = [16, 8], strides = [1, 1]} : vector<16x64xbf16> to vector<16x8xbf16>
    %c1_46 = arith.constant 1 : index
    %c0_47 = arith.constant 0 : index
    %c0_48 = arith.constant 0 : index
    %87 = vector.load %arg22[%c1_46, %c0_47, %c0_48] : memref<4x16x8xbf16, #tpu.memory_space<vmem>>, vector<1x16x8xbf16>
    %88 = vector.shape_cast %87 : vector<1x16x8xbf16> to vector<16x8xbf16>
    %89 = vector.shape_cast %86 : vector<16x8xbf16> to vector<1x16x8xbf16>
    tpu.vector_store %arg22[%c1_46, %c0_47, %c0_48], %89 {strides = array<i32>} : memref<4x16x8xbf16, #tpu.memory_space<vmem>>, vector<1x16x8xbf16>,
    %90 = vector.extract_strided_slice %65 {offsets = [0, 8], sizes = [8, 8], strides = [1, 1]} : vector<8x64xbf16> to vector<8x8xbf16>
    %c1_49 = arith.constant 1 : index
    %c0_50 = arith.constant 0 : index
    %c0_51 = arith.constant 0 : index
    %91 = vector.load %arg21[%c1_49, %c0_50, %c0_51] : memref<4x8x8xbf16, #tpu.memory_space<vmem>>, vector<1x8x8xbf16>
    %92 = vector.shape_cast %91 : vector<1x8x8xbf16> to vector<8x8xbf16>
    %93 = vector.shape_cast %90 : vector<8x8xbf16> to vector<1x8x8xbf16>
    tpu.vector_store %arg21[%c1_49, %c0_50, %c0_51], %93 {strides = array<i32>} : memref<4x8x8xbf16, #tpu.memory_space<vmem>>, vector<1x8x8xbf16>,
    %94 = vector.extract_strided_slice %65 {offsets = [0, 40], sizes = [8, 8], strides = [1, 1]} : vector<8x64xbf16> to vector<8x8xbf16>
    %c1_52 = arith.constant 1 : index
    %c0_53 = arith.constant 0 : index
    %c0_54 = arith.constant 0 : index
    %95 = vector.load %arg23[%c1_52, %c0_53, %c0_54] : memref<4x8x8xbf16, #tpu.memory_space<vmem>>, vector<1x8x8xbf16>
    %96 = vector.shape_cast %95 : vector<1x8x8xbf16> to vector<8x8xbf16>
    %97 = vector.shape_cast %94 : vector<8x8xbf16> to vector<1x8x8xbf16>
    tpu.vector_store %arg23[%c1_52, %c0_53, %c0_54], %97 {strides = array<i32>} : memref<4x8x8xbf16, #tpu.memory_space<vmem>>, vector<1x8x8xbf16>,
    %98 = vector.extract_strided_slice %58 {offsets = [0, 16], sizes = [16, 8], strides = [1, 1]} : vector<16x64xbf16> to vector<16x8xbf16>
    %c2 = arith.constant 2 : index
    %c0_55 = arith.constant 0 : index
    %c0_56 = arith.constant 0 : index
    %99 = vector.load %arg20[%c2, %c0_55, %c0_56] : memref<4x16x8xbf16, #tpu.memory_space<vmem>>, vector<1x16x8xbf16>
    %100 = vector.shape_cast %99 : vector<1x16x8xbf16> to vector<16x8xbf16>
    %101 = vector.shape_cast %98 : vector<16x8xbf16> to vector<1x16x8xbf16>
    tpu.vector_store %arg20[%c2, %c0_55, %c0_56], %101 {strides = array<i32>} : memref<4x16x8xbf16, #tpu.memory_space<vmem>>, vector<1x16x8xbf16>,
    %102 = vector.extract_strided_slice %58 {offsets = [0, 48], sizes = [16, 8], strides = [1, 1]} : vector<16x64xbf16> to vector<16x8xbf16>
    %c2_57 = arith.constant 2 : index
    %c0_58 = arith.constant 0 : index
    %c0_59 = arith.constant 0 : index
    %103 = vector.load %arg22[%c2_57, %c0_58, %c0_59] : memref<4x16x8xbf16, #tpu.memory_space<vmem>>, vector<1x16x8xbf16>
    %104 = vector.shape_cast %103 : vector<1x16x8xbf16> to vector<16x8xbf16>
    %105 = vector.shape_cast %102 : vector<16x8xbf16> to vector<1x16x8xbf16>
    tpu.vector_store %arg22[%c2_57, %c0_58, %c0_59], %105 {strides = array<i32>} : memref<4x16x8xbf16, #tpu.memory_space<vmem>>, vector<1x16x8xbf16>,
    %106 = vector.extract_strided_slice %65 {offsets = [0, 16], sizes = [8, 8], strides = [1, 1]} : vector<8x64xbf16> to vector<8x8xbf16>
    %c2_60 = arith.constant 2 : index
    %c0_61 = arith.constant 0 : index
    %c0_62 = arith.constant 0 : index
    %107 = vector.load %arg21[%c2_60, %c0_61, %c0_62] : memref<4x8x8xbf16, #tpu.memory_space<vmem>>, vector<1x8x8xbf16>
    %108 = vector.shape_cast %107 : vector<1x8x8xbf16> to vector<8x8xbf16>
    %109 = vector.shape_cast %106 : vector<8x8xbf16> to vector<1x8x8xbf16>
    tpu.vector_store %arg21[%c2_60, %c0_61, %c0_62], %109 {strides = array<i32>} : memref<4x8x8xbf16, #tpu.memory_space<vmem>>, vector<1x8x8xbf16>,
    %110 = vector.extract_strided_slice %65 {offsets = [0, 48], sizes = [8, 8], strides = [1, 1]} : vector<8x64xbf16> to vector<8x8xbf16>
    %c2_63 = arith.constant 2 : index
    %c0_64 = arith.constant 0 : index
    %c0_65 = arith.constant 0 : index
    %111 = vector.load %arg23[%c2_63, %c0_64, %c0_65] : memref<4x8x8xbf16, #tpu.memory_space<vmem>>, vector<1x8x8xbf16>
    %112 = vector.shape_cast %111 : vector<1x8x8xbf16> to vector<8x8xbf16>
    %113 = vector.shape_cast %110 : vector<8x8xbf16> to vector<1x8x8xbf16>
    tpu.vector_store %arg23[%c2_63, %c0_64, %c0_65], %113 {strides = array<i32>} : memref<4x8x8xbf16, #tpu.memory_space<vmem>>, vector<1x8x8xbf16>,
    %114 = vector.extract_strided_slice %58 {offsets = [0, 24], sizes = [16, 8], strides = [1, 1]} : vector<16x64xbf16> to vector<16x8xbf16>
    %c3 = arith.constant 3 : index
    %c0_66 = arith.constant 0 : index
    %c0_67 = arith.constant 0 : index
    %115 = vector.load %arg20[%c3, %c0_66, %c0_67] : memref<4x16x8xbf16, #tpu.memory_space<vmem>>, vector<1x16x8xbf16>
    %116 = vector.shape_cast %115 : vector<1x16x8xbf16> to vector<16x8xbf16>
    %117 = vector.shape_cast %114 : vector<16x8xbf16> to vector<1x16x8xbf16>
    tpu.vector_store %arg20[%c3, %c0_66, %c0_67], %117 {strides = array<i32>} : memref<4x16x8xbf16, #tpu.memory_space<vmem>>, vector<1x16x8xbf16>,
    %118 = vector.extract_strided_slice %58 {offsets = [0, 56], sizes = [16, 8], strides = [1, 1]} : vector<16x64xbf16> to vector<16x8xbf16>
    %c3_68 = arith.constant 3 : index
    %c0_69 = arith.constant 0 : index
    %c0_70 = arith.constant 0 : index
    %119 = vector.load %arg22[%c3_68, %c0_69, %c0_70] : memref<4x16x8xbf16, #tpu.memory_space<vmem>>, vector<1x16x8xbf16>
    %120 = vector.shape_cast %119 : vector<1x16x8xbf16> to vector<16x8xbf16>
    %121 = vector.shape_cast %118 : vector<16x8xbf16> to vector<1x16x8xbf16>
    tpu.vector_store %arg22[%c3_68, %c0_69, %c0_70], %121 {strides = array<i32>} : memref<4x16x8xbf16, #tpu.memory_space<vmem>>, vector<1x16x8xbf16>,
    %122 = vector.extract_strided_slice %65 {offsets = [0, 24], sizes = [8, 8], strides = [1, 1]} : vector<8x64xbf16> to vector<8x8xbf16>
    %c3_71 = arith.constant 3 : index
    %c0_72 = arith.constant 0 : index
    %c0_73 = arith.constant 0 : index
    %123 = vector.load %arg21[%c3_71, %c0_72, %c0_73] : memref<4x8x8xbf16, #tpu.memory_space<vmem>>, vector<1x8x8xbf16>
    %124 = vector.shape_cast %123 : vector<1x8x8xbf16> to vector<8x8xbf16>
    %125 = vector.shape_cast %122 : vector<8x8xbf16> to vector<1x8x8xbf16>
    tpu.vector_store %arg21[%c3_71, %c0_72, %c0_73], %125 {strides = array<i32>} : memref<4x8x8xbf16, #tpu.memory_space<vmem>>, vector<1x8x8xbf16>,
    %126 = vector.extract_strided_slice %65 {offsets = [0, 56], sizes = [8, 8], strides = [1, 1]} : vector<8x64xbf16> to vector<8x8xbf16>
    %c3_74 = arith.constant 3 : index
    %c0_75 = arith.constant 0 : index
    %c0_76 = arith.constant 0 : index
    %127 = vector.load %arg23[%c3_74, %c0_75, %c0_76] : memref<4x8x8xbf16, #tpu.memory_space<vmem>>, vector<1x8x8xbf16>
    %128 = vector.shape_cast %127 : vector<1x8x8xbf16> to vector<8x8xbf16>
    %129 = vector.shape_cast %126 : vector<8x8xbf16> to vector<1x8x8xbf16>
    tpu.vector_store %arg23[%c3_74, %c0_75, %c0_76], %129 {strides = array<i32>} : memref<4x8x8xbf16, #tpu.memory_space<vmem>>, vector<1x8x8xbf16>,
    %c0_77 = arith.constant 0 : index
    %c0_78 = arith.constant 0 : index
    %c0_79 = arith.constant 0 : index
    %130 = vector.load %arg3[%c0_77, %c0_78, %c0_79] : memref<1x1x8xf32, #tpu.memory_space<vmem>>, vector<1x1x8xf32>
    %131 = vector.shape_cast %130 : vector<1x1x8xf32> to vector<1x8xf32>
    %cst_80 = arith.constant 0.000000e+00 : f32
    %132 = vector.broadcast %cst_80 : f32 to vector<1x8xf32>
    %133 = arith.cmpf oeq, %131, %132 : vector<1x8xf32>
    %cst_81 = arith.constant -9.000000e+15 : f32
    %134 = vector.broadcast %cst_81 : f32 to vector<1x8xf32>
    %135 = arith.select %133, %134, %131 : vector<1x8xi1>, vector<1x8xf32>
    %c0_i32 = arith.constant 0 : i32
    %c4_i32 = arith.constant 4 : i32
    %136 = arith.addi %c0_i32, %c4_i32 : i32
    %c1_i32 = arith.constant 1 : i32
    scf.for %arg28 = %c0_i32 to %136 step %c1_i32  : i32 {
      %c1_i32_144 = arith.constant 1 : i32
      %189 = arith.muli %arg28, %c1_i32_144 : i32
      %c0_i32_145 = arith.constant 0 : i32
      %190 = arith.addi %c0_i32_145, %189 : i32
      %191 = arith.index_cast %190 : i32 to index
      %c0_146 = arith.constant 0 : index
      %c0_147 = arith.constant 0 : index
      %192 = vector.load %arg20[%191, %c0_146, %c0_147] : memref<4x16x8xbf16, #tpu.memory_space<vmem>>, vector<1x16x8xbf16>
      %193 = vector.shape_cast %192 : vector<1x16x8xbf16> to vector<16x8xbf16>
      %194 = arith.index_cast %190 : i32 to index
      %c0_148 = arith.constant 0 : index
      %c0_149 = arith.constant 0 : index
      %195 = vector.load %arg21[%194, %c0_148, %c0_149] : memref<4x8x8xbf16, #tpu.memory_space<vmem>>, vector<1x8x8xbf16>
      %196 = vector.shape_cast %195 : vector<1x8x8xbf16> to vector<8x8xbf16>
      %cst_150 = arith.constant dense<0.000000e+00> : vector<16x8xf32>
      %197 = tpu.matmul %193, %196, %cst_150 {dimension_numbers = #tpu.dot_dimension_numbers<[1], [1], [0], [0], [0, 0, 1, 0], [], []>} : vector<16x8xbf16>, vector<8x8xbf16>, vector<16x8xf32> -> vector<16x8xf32>
      %cst_151 = arith.constant -5.000000e+04 : f32
      %cst_152 = arith.constant 5.000000e+04 : f32
      %198 = vector.broadcast %cst_151 : f32 to vector<16x8xf32>
      %199 = arith.maximumf %198, %197 : vector<16x8xf32>
      %200 = vector.broadcast %cst_152 : f32 to vector<16x8xf32>
      %201 = arith.minimumf %200, %199 : vector<16x8xf32>
      %202 = vector.broadcast %135 : vector<1x8xf32> to vector<16x8xf32>
      %203 = arith.addf %201, %202 : vector<16x8xf32>
      %cst_153 = arith.constant dense<0xFF800000> : vector<16xf32>
      %204 = vector.multi_reduction <maximumf>, %203, %cst_153 [1] : vector<16x8xf32> to vector<16xf32>
      %205 = vector.shape_cast %204 : vector<16xf32> to vector<16x1xf32>
      %206 = vector.broadcast %205 : vector<16x1xf32> to vector<16x8xf32>
      %207 = arith.subf %203, %206 : vector<16x8xf32>
      %208 = math.exp %207 : vector<16x8xf32>
      %cst_154 = arith.constant dense<0.000000e+00> : vector<16xf32>
      %209 = vector.multi_reduction <add>, %208, %cst_154 [1] : vector<16x8xf32> to vector<16xf32>
      %210 = vector.shape_cast %209 : vector<16xf32> to vector<16x1xf32>
      %211 = tpu.reciprocal %210 : vector<16x1xf32> -> vector<16x1xf32>
      %212 = vector.broadcast %211 : vector<16x1xf32> to vector<16x8xf32>
      %213 = arith.mulf %208, %212 : vector<16x8xf32>
      %214 = tpu.transpose %201, [1, 0] : vector<16x8xf32> -> vector<8x16xf32>
      %cst_155 = arith.constant dense<0xFF800000> : vector<8xf32>
      %215 = vector.multi_reduction <maximumf>, %214, %cst_155 [1] : vector<8x16xf32> to vector<8xf32>
      %216 = vector.shape_cast %215 : vector<8xf32> to vector<8x1xf32>
      %217 = vector.broadcast %216 : vector<8x1xf32> to vector<8x16xf32>
      %218 = arith.subf %214, %217 : vector<8x16xf32>
      %219 = math.exp %218 : vector<8x16xf32>
      %cst_156 = arith.constant dense<0.000000e+00> : vector<8xf32>
      %220 = vector.multi_reduction <add>, %219, %cst_156 [1] : vector<8x16xf32> to vector<8xf32>
      %221 = vector.shape_cast %220 : vector<8xf32> to vector<8x1xf32>
      %222 = tpu.reciprocal %221 : vector<8x1xf32> -> vector<8x1xf32>
      %223 = vector.broadcast %222 : vector<8x1xf32> to vector<8x16xf32>
      %224 = arith.mulf %219, %223 : vector<8x16xf32>
      %225 = arith.truncf %213 : vector<16x8xf32> to vector<16x8xbf16>
      %226 = arith.index_cast %190 : i32 to index
      %c0_157 = arith.constant 0 : index
      %c0_158 = arith.constant 0 : index
      %227 = vector.load %arg23[%226, %c0_157, %c0_158] : memref<4x8x8xbf16, #tpu.memory_space<vmem>>, vector<1x8x8xbf16>
      %228 = vector.shape_cast %227 : vector<1x8x8xbf16> to vector<8x8xbf16>
      %cst_159 = arith.constant dense<0.000000e+00> : vector<16x8xf32>
      %229 = tpu.matmul %225, %228, %cst_159 {dimension_numbers = #tpu.dot_dimension_numbers<[1], [0], [0], [1], [0, 0, 1, 1], [], []>} : vector<16x8xbf16>, vector<8x8xbf16>, vector<16x8xf32> -> vector<16x8xf32>
      %230 = arith.index_cast %190 : i32 to index
      %c0_160 = arith.constant 0 : index
      %c0_161 = arith.constant 0 : index
      %231 = vector.load %arg24[%230, %c0_160, %c0_161] : memref<4x16x8xf32, #tpu.memory_space<vmem>>, vector<1x16x8xf32>
      %232 = vector.shape_cast %231 : vector<1x16x8xf32> to vector<16x8xf32>
      %233 = vector.shape_cast %229 : vector<16x8xf32> to vector<1x16x8xf32>
      tpu.vector_store %arg24[%230, %c0_160, %c0_161], %233 {strides = array<i32>} : memref<4x16x8xf32, #tpu.memory_space<vmem>>, vector<1x16x8xf32>,
      %234 = arith.truncf %224 : vector<8x16xf32> to vector<8x16xbf16>
      %235 = arith.index_cast %190 : i32 to index
      %c0_162 = arith.constant 0 : index
      %c0_163 = arith.constant 0 : index
      %236 = vector.load %arg22[%235, %c0_162, %c0_163] : memref<4x16x8xbf16, #tpu.memory_space<vmem>>, vector<1x16x8xbf16>
      %237 = vector.shape_cast %236 : vector<1x16x8xbf16> to vector<16x8xbf16>
      %cst_164 = arith.constant dense<0.000000e+00> : vector<8x8xf32>
      %238 = tpu.matmul %234, %237, %cst_164 {dimension_numbers = #tpu.dot_dimension_numbers<[1], [0], [0], [1], [0, 0, 1, 1], [], []>} : vector<8x16xbf16>, vector<16x8xbf16>, vector<8x8xf32> -> vector<8x8xf32>
      %239 = arith.index_cast %190 : i32 to index
      %c0_165 = arith.constant 0 : index
      %c0_166 = arith.constant 0 : index
      %240 = vector.load %arg25[%239, %c0_165, %c0_166] : memref<4x8x8xf32, #tpu.memory_space<vmem>>, vector<1x8x8xf32>
      %241 = vector.shape_cast %240 : vector<1x8x8xf32> to vector<8x8xf32>
      %242 = vector.shape_cast %238 : vector<8x8xf32> to vector<1x8x8xf32>
      tpu.vector_store %arg25[%239, %c0_165, %c0_166], %242 {strides = array<i32>} : memref<4x8x8xf32, #tpu.memory_space<vmem>>, vector<1x8x8xf32>,
    }
    %c4_i32_82 = arith.constant 4 : i32
    %c0_83 = arith.constant 0 : index
    %c0_84 = arith.constant 0 : index
    %c0_85 = arith.constant 0 : index
    %137 = vector.load %arg24[%c0_83, %c0_84, %c0_85] : memref<4x16x8xf32, #tpu.memory_space<vmem>>, vector<1x16x8xf32>
    %138 = vector.shape_cast %137 : vector<1x16x8xf32> to vector<16x8xf32>
    %c0_86 = arith.constant 0 : index
    %c0_87 = arith.constant 0 : index
    %139 = vector.load %arg26[%c0_86, %c0_87] : memref<16x32xf32, #tpu.memory_space<vmem>>, vector<16x8xf32>
    tpu.vector_store %arg26[%c0_86, %c0_87], %138 {strides = array<i32>} : memref<16x32xf32, #tpu.memory_space<vmem>>, vector<16x8xf32>,
    %c0_88 = arith.constant 0 : index
    %c0_89 = arith.constant 0 : index
    %c0_90 = arith.constant 0 : index
    %140 = vector.load %arg25[%c0_88, %c0_89, %c0_90] : memref<4x8x8xf32, #tpu.memory_space<vmem>>, vector<1x8x8xf32>
    %141 = vector.shape_cast %140 : vector<1x8x8xf32> to vector<8x8xf32>
    %c0_91 = arith.constant 0 : index
    %c0_92 = arith.constant 0 : index
    %142 = vector.load %arg27[%c0_91, %c0_92] : memref<8x32xf32, #tpu.memory_space<vmem>>, vector<8x8xf32>
    tpu.vector_store %arg27[%c0_91, %c0_92], %141 {strides = array<i32>} : memref<8x32xf32, #tpu.memory_space<vmem>>, vector<8x8xf32>,
    %c1_93 = arith.constant 1 : index
    %c0_94 = arith.constant 0 : index
    %c0_95 = arith.constant 0 : index
    %143 = vector.load %arg24[%c1_93, %c0_94, %c0_95] : memref<4x16x8xf32, #tpu.memory_space<vmem>>, vector<1x16x8xf32>
    %144 = vector.shape_cast %143 : vector<1x16x8xf32> to vector<16x8xf32>
    %c0_96 = arith.constant 0 : index
    %c8 = arith.constant 8 : index
    %145 = vector.load %arg26[%c0_96, %c8] : memref<16x32xf32, #tpu.memory_space<vmem>>, vector<16x8xf32>
    tpu.vector_store %arg26[%c0_96, %c8], %144 {strides = array<i32>} : memref<16x32xf32, #tpu.memory_space<vmem>>, vector<16x8xf32>,
    %c1_97 = arith.constant 1 : index
    %c0_98 = arith.constant 0 : index
    %c0_99 = arith.constant 0 : index
    %146 = vector.load %arg25[%c1_97, %c0_98, %c0_99] : memref<4x8x8xf32, #tpu.memory_space<vmem>>, vector<1x8x8xf32>
    %147 = vector.shape_cast %146 : vector<1x8x8xf32> to vector<8x8xf32>
    %c0_100 = arith.constant 0 : index
    %c8_101 = arith.constant 8 : index
    %148 = vector.load %arg27[%c0_100, %c8_101] : memref<8x32xf32, #tpu.memory_space<vmem>>, vector<8x8xf32>
    tpu.vector_store %arg27[%c0_100, %c8_101], %147 {strides = array<i32>} : memref<8x32xf32, #tpu.memory_space<vmem>>, vector<8x8xf32>,
    %c2_102 = arith.constant 2 : index
    %c0_103 = arith.constant 0 : index
    %c0_104 = arith.constant 0 : index
    %149 = vector.load %arg24[%c2_102, %c0_103, %c0_104] : memref<4x16x8xf32, #tpu.memory_space<vmem>>, vector<1x16x8xf32>
    %150 = vector.shape_cast %149 : vector<1x16x8xf32> to vector<16x8xf32>
    %c0_105 = arith.constant 0 : index
    %c16 = arith.constant 16 : index
    %151 = vector.load %arg26[%c0_105, %c16] : memref<16x32xf32, #tpu.memory_space<vmem>>, vector<16x8xf32>
    tpu.vector_store %arg26[%c0_105, %c16], %150 {strides = array<i32>} : memref<16x32xf32, #tpu.memory_space<vmem>>, vector<16x8xf32>,
    %c2_106 = arith.constant 2 : index
    %c0_107 = arith.constant 0 : index
    %c0_108 = arith.constant 0 : index
    %152 = vector.load %arg25[%c2_106, %c0_107, %c0_108] : memref<4x8x8xf32, #tpu.memory_space<vmem>>, vector<1x8x8xf32>
    %153 = vector.shape_cast %152 : vector<1x8x8xf32> to vector<8x8xf32>
    %c0_109 = arith.constant 0 : index
    %c16_110 = arith.constant 16 : index
    %154 = vector.load %arg27[%c0_109, %c16_110] : memref<8x32xf32, #tpu.memory_space<vmem>>, vector<8x8xf32>
    tpu.vector_store %arg27[%c0_109, %c16_110], %153 {strides = array<i32>} : memref<8x32xf32, #tpu.memory_space<vmem>>, vector<8x8xf32>,
    %c3_111 = arith.constant 3 : index
    %c0_112 = arith.constant 0 : index
    %c0_113 = arith.constant 0 : index
    %155 = vector.load %arg24[%c3_111, %c0_112, %c0_113] : memref<4x16x8xf32, #tpu.memory_space<vmem>>, vector<1x16x8xf32>
    %156 = vector.shape_cast %155 : vector<1x16x8xf32> to vector<16x8xf32>
    %c0_114 = arith.constant 0 : index
    %c24 = arith.constant 24 : index
    %157 = vector.load %arg26[%c0_114, %c24] : memref<16x32xf32, #tpu.memory_space<vmem>>, vector<16x8xf32>
    tpu.vector_store %arg26[%c0_114, %c24], %156 {strides = array<i32>} : memref<16x32xf32, #tpu.memory_space<vmem>>, vector<16x8xf32>,
    %c3_115 = arith.constant 3 : index
    %c0_116 = arith.constant 0 : index
    %c0_117 = arith.constant 0 : index
    %158 = vector.load %arg25[%c3_115, %c0_116, %c0_117] : memref<4x8x8xf32, #tpu.memory_space<vmem>>, vector<1x8x8xf32>
    %159 = vector.shape_cast %158 : vector<1x8x8xf32> to vector<8x8xf32>
    %c0_118 = arith.constant 0 : index
    %c24_119 = arith.constant 24 : index
    %160 = vector.load %arg27[%c0_118, %c24_119] : memref<8x32xf32, #tpu.memory_space<vmem>>, vector<8x8xf32>
    tpu.vector_store %arg27[%c0_118, %c24_119], %159 {strides = array<i32>} : memref<8x32xf32, #tpu.memory_space<vmem>>, vector<8x8xf32>,
    %c0_120 = arith.constant 0 : index
    %c0_121 = arith.constant 0 : index
    %161 = vector.load %arg26[%c0_120, %c0_121] : memref<16x32xf32, #tpu.memory_space<vmem>>, vector<16x32xf32>
    %162 = arith.truncf %161 : vector<16x32xf32> to vector<16x32xbf16>
    %c0_122 = arith.constant 0 : index
    %c0_123 = arith.constant 0 : index
    %163 = vector.load %arg12[%c0_122, %c0_123] : memref<32x32xbf16, #tpu.memory_space<vmem>>, vector<32x32xbf16>
    %cst_124 = arith.constant dense<0.000000e+00> : vector<16x32xf32>
    %164 = tpu.matmul %162, %163, %cst_124 {dimension_numbers = #tpu.dot_dimension_numbers<[1], [0], [0], [1], [0, 0, 1, 1], [], []>} : vector<16x32xbf16>, vector<32x32xbf16>, vector<16x32xf32> -> vector<16x32xf32>
    %c0_125 = arith.constant 0 : index
    %c0_126 = arith.constant 0 : index
    %165 = vector.load %arg13[%c0_125, %c0_126] : memref<1x32xf32, #tpu.memory_space<vmem>>, vector<1x32xf32>
    %166 = vector.broadcast %165 : vector<1x32xf32> to vector<16x32xf32>
    %167 = arith.addf %164, %166 : vector<16x32xf32>
    %c0_127 = arith.constant 0 : index
    %c0_128 = arith.constant 0 : index
    %168 = vector.load %arg27[%c0_127, %c0_128] : memref<8x32xf32, #tpu.memory_space<vmem>>, vector<8x32xf32>
    %169 = arith.truncf %168 : vector<8x32xf32> to vector<8x32xbf16>
    %c0_129 = arith.constant 0 : index
    %c0_130 = arith.constant 0 : index
    %170 = vector.load %arg14[%c0_129, %c0_130] : memref<32x32xbf16, #tpu.memory_space<vmem>>, vector<32x32xbf16>
    %cst_131 = arith.constant dense<0.000000e+00> : vector<8x32xf32>
    %171 = tpu.matmul %169, %170, %cst_131 {dimension_numbers = #tpu.dot_dimension_numbers<[1], [0], [0], [1], [0, 0, 1, 1], [], []>} : vector<8x32xbf16>, vector<32x32xbf16>, vector<8x32xf32> -> vector<8x32xf32>
    %c0_132 = arith.constant 0 : index
    %c0_133 = arith.constant 0 : index
    %172 = vector.load %arg15[%c0_132, %c0_133] : memref<1x32xf32, #tpu.memory_space<vmem>>, vector<1x32xf32>
    %173 = vector.broadcast %172 : vector<1x32xf32> to vector<8x32xf32>
    %174 = arith.addf %171, %173 : vector<8x32xf32>
    %c0_134 = arith.constant 0 : index
    %c0_135 = arith.constant 0 : index
    %175 = vector.load %arg16[%c0_134, %c0_135] : memref<1x32xf32, #tpu.memory_space<vmem>>, vector<1x32xf32>
    %176 = vector.broadcast %175 : vector<1x32xf32> to vector<16x32xf32>
    %177 = arith.mulf %176, %167 : vector<16x32xf32>
    %178 = arith.addf %27, %177 : vector<16x32xf32>
    %c0_136 = arith.constant 0 : index
    %c0_137 = arith.constant 0 : index
    %c0_138 = arith.constant 0 : index
    %179 = vector.load %arg18[%c0_136, %c0_137, %c0_138] : memref<1x16x32xf32, #tpu.memory_space<vmem>>, vector<1x16x32xf32>
    %180 = vector.shape_cast %179 : vector<1x16x32xf32> to vector<16x32xf32>
    %181 = vector.shape_cast %178 : vector<16x32xf32> to vector<1x16x32xf32>
    tpu.vector_store %arg18[%c0_136, %c0_137, %c0_138], %181 {strides = array<i32>} : memref<1x16x32xf32, #tpu.memory_space<vmem>>, vector<1x16x32xf32>,
    %c0_139 = arith.constant 0 : index
    %c0_140 = arith.constant 0 : index
    %182 = vector.load %arg17[%c0_139, %c0_140] : memref<1x32xf32, #tpu.memory_space<vmem>>, vector<1x32xf32>
    %183 = vector.broadcast %182 : vector<1x32xf32> to vector<8x32xf32>
    %184 = arith.mulf %183, %174 : vector<8x32xf32>
    %185 = arith.addf %51, %184 : vector<8x32xf32>
    %c0_141 = arith.constant 0 : index
    %c0_142 = arith.constant 0 : index
    %c0_143 = arith.constant 0 : index
    %186 = vector.load %arg19[%c0_141, %c0_142, %c0_143] : memref<1x8x32xf32, #tpu.memory_space<vmem>>, vector<1x8x32xf32>
    %187 = vector.shape_cast %186 : vector<1x8x32xf32> to vector<8x32xf32>
    %188 = vector.shape_cast %185 : vector<8x32xf32> to vector<1x8x32xf32>
    tpu.vector_store %arg19[%c0_141, %c0_142, %c0_143], %188 {strides = array<i32>} : memref<1x8x32xf32, #tpu.memory_space<vmem>>, vector<1x8x32xf32>,
    return
  }
  func.func @transform_0(%arg0: i32) -> (i32, i32, i32) {
    %c0_i32 = arith.constant 0 : i32
    %c0_i32_0 = arith.constant 0 : i32
    %c0_i32_1 = arith.constant 0 : i32
    return %arg0, %c0_i32, %c0_i32_0 : i32, i32, i32
  }
  func.func @transform_1(%arg0: i32) -> (i32, i32, i32) {
    %c0_i32 = arith.constant 0 : i32
    %c0_i32_0 = arith.constant 0 : i32
    %c0_i32_1 = arith.constant 0 : i32
    return %arg0, %c0_i32, %c0_i32_0 : i32, i32, i32
  }
  func.func @transform_2(%arg0: i32) -> (i32, i32, i32) {
    %c0_i32 = arith.constant 0 : i32
    %c0_i32_0 = arith.constant 0 : i32
    %c0_i32_1 = arith.constant 0 : i32
    return %arg0, %c0_i32, %c0_i32_0 : i32, i32, i32
  }
  func.func @transform_3(%arg0: i32) -> (i32, i32) {
    %c0_i32 = arith.constant 0 : i32
    %c0_i32_0 = arith.constant 0 : i32
    %c0_i32_1 = arith.constant 0 : i32
    return %c0_i32, %c0_i32_0 : i32, i32
  }
  func.func @transform_4(%arg0: i32) -> (i32, i32) {
    %c0_i32 = arith.constant 0 : i32
    %c0_i32_0 = arith.constant 0 : i32
    %c0_i32_1 = arith.constant 0 : i32
    return %c0_i32, %c0_i32_0 : i32, i32
  }
  func.func @transform_5(%arg0: i32) -> (i32, i32) {
    %c0_i32 = arith.constant 0 : i32
    %c0_i32_0 = arith.constant 0 : i32
    %c0_i32_1 = arith.constant 0 : i32
    return %c0_i32, %c0_i32_0 : i32, i32
  }
  func.func @transform_6(%arg0: i32) -> (i32, i32) {
    %c0_i32 = arith.constant 0 : i32
    %c0_i32_0 = arith.constant 0 : i32
    %c0_i32_1 = arith.constant 0 : i32
    return %c0_i32, %c0_i32_0 : i32, i32
  }
  func.func @transform_7(%arg0: i32) -> (i32, i32) {
    %c0_i32 = arith.constant 0 : i32
    %c0_i32_0 = arith.constant 0 : i32
    %c0_i32_1 = arith.constant 0 : i32
    return %c0_i32, %c0_i32_0 : i32, i32
  }
  func.func @transform_8(%arg0: i32) -> (i32, i32) {
    %c0_i32 = arith.constant 0 : i32
    %c0_i32_0 = arith.constant 0 : i32
    %c0_i32_1 = arith.constant 0 : i32
    return %c0_i32, %c0_i32_0 : i32, i32
  }
  func.func @transform_9(%arg0: i32) -> (i32, i32) {
    %c0_i32 = arith.constant 0 : i32
    %c0_i32_0 = arith.constant 0 : i32
    %c0_i32_1 = arith.constant 0 : i32
    return %c0_i32, %c0_i32_0 : i32, i32
  }
  func.func @transform_10(%arg0: i32) -> (i32, i32) {
    %c0_i32 = arith.constant 0 : i32
    %c0_i32_0 = arith.constant 0 : i32
    %c0_i32_1 = arith.constant 0 : i32
    return %c0_i32, %c0_i32_0 : i32, i32
  }
  func.func @transform_11(%arg0: i32) -> (i32, i32) {
    %c0_i32 = arith.constant 0 : i32
    %c0_i32_0 = arith.constant 0 : i32
    %c0_i32_1 = arith.constant 0 : i32
    return %c0_i32, %c0_i32_0 : i32, i32
  }
  func.func @transform_12(%arg0: i32) -> (i32, i32) {
    %c0_i32 = arith.constant 0 : i32
    %c0_i32_0 = arith.constant 0 : i32
    %c0_i32_1 = arith.constant 0 : i32
    return %c0_i32, %c0_i32_0 : i32, i32
  }
  func.func @transform_13(%arg0: i32) -> (i32, i32) {
    %c0_i32 = arith.constant 0 : i32
    %c0_i32_0 = arith.constant 0 : i32
    %c0_i32_1 = arith.constant 0 : i32
    return %c0_i32, %c0_i32_0 : i32, i32
  }
  func.func @transform_14(%arg0: i32) -> (i32, i32) {
    %c0_i32 = arith.constant 0 : i32
    %c0_i32_0 = arith.constant 0 : i32
    %c0_i32_1 = arith.constant 0 : i32
    return %c0_i32, %c0_i32_0 : i32, i32
  }
  func.func @transform_15(%arg0: i32) -> (i32, i32) {
    %c0_i32 = arith.constant 0 : i32
    %c0_i32_0 = arith.constant 0 : i32
    %c0_i32_1 = arith.constant 0 : i32
    return %c0_i32, %c0_i32_0 : i32, i32
  }
  func.func @transform_16(%arg0: i32) -> (i32, i32) {
    %c0_i32 = arith.constant 0 : i32
    %c0_i32_0 = arith.constant 0 : i32
    %c0_i32_1 = arith.constant 0 : i32
    return %c0_i32, %c0_i32_0 : i32, i32
  }
  func.func @transform_17(%arg0: i32) -> (i32, i32, i32) {
    %c0_i32 = arith.constant 0 : i32
    %c0_i32_0 = arith.constant 0 : i32
    %c0_i32_1 = arith.constant 0 : i32
    return %arg0, %c0_i32, %c0_i32_0 : i32, i32, i32
  }
  func.func @transform_18(%arg0: i32) -> (i32, i32, i32) {
    %c0_i32 = arith.constant 0 : i32
    %c0_i32_0 = arith.constant 0 : i32
    %c0_i32_1 = arith.constant 0 : i32
    return %arg0, %c0_i32, %c0_i32_0 : i32, i32, i32
  }
}

</mosaic_0001>

<llo_original>
// kernel: tpu_custom_call.1
$region0: #{tpu_custom_call.1}
  #allocation0 [shape = 'u32[]', space=smem, size = 0x4, offset = 0x4, fixed_abs, tag = 'smem constant byte address 0x4 - core index']
  #allocation1 [shape = 'u32[144,128]{1,0:T(1,128)}', space=vmem, size = 0x12000, scoped, tag = 'internal scratch']
  #allocation2 [shape = 'bf16[4,16,8]{2,1,0:T(16,128)(2,1)}', space=vmem, size = 0x4000, scoped, tag = 'scratch operand']
  #allocation3 [shape = 'bf16[4,8,8]{2,1,0:T(8,128)(2,1)}', space=vmem, size = 0x2000, scoped, tag = 'scratch operand']
  #allocation4 [shape = 'bf16[4,16,8]{2,1,0:T(16,128)(2,1)}', space=vmem, size = 0x4000, scoped, tag = 'scratch operand']
  #allocation5 [shape = 'bf16[4,8,8]{2,1,0:T(8,128)(2,1)}', space=vmem, size = 0x2000, scoped, tag = 'scratch operand']
  #allocation6 [shape = 'f32[4,16,8]{2,1,0:T(8,128)}', space=vmem, size = 0x8000, scoped, tag = 'scratch operand']
  #allocation7 [shape = 'f32[4,8,8]{2,1,0:T(8,128)}', space=vmem, size = 0x4000, scoped, tag = 'scratch operand']
  #allocation8 [shape = 'f32[16,32]{1,0:T(8,128)}', space=vmem, size = 0x2000, scoped, tag = 'scratch operand']
  #allocation9 [shape = 'f32[8,32]{1,0:T(8,128)}', space=vmem, size = 0x1000, scoped, tag = 'scratch operand']
  %s0 = inlined_call_operand.hbm [shape: f32[2,16,32], index: 0, kind: input, shape index: {}]
  %s1 = inlined_call_operand.hbm [shape: f32[2,8,32], index: 1, kind: input, shape index: {}]
  %s2 = inlined_call_operand.hbm [shape: f32[2,1,8], index: 2, kind: input, shape index: {}]
  %s3 = inlined_call_operand.vmem [shape: f32[1,32], index: 3, kind: input, shape index: {}]
  %s4 = inlined_call_operand.hbm [shape: f32[1,32], index: 4, kind: input, shape index: {}]
  %s5 = inlined_call_operand.hbm [shape: f32[1,32], index: 5, kind: input, shape index: {}]
  %s6 = inlined_call_operand.hbm [shape: f32[1,32], index: 6, kind: input, shape index: {}]
  %s7 = inlined_call_operand.vmem [shape: bf16[32,64], index: 7, kind: input, shape index: {}]
  %s8 = inlined_call_operand.hbm [shape: f32[1,64], index: 8, kind: input, shape index: {}]
  %s9 = inlined_call_operand.vmem [shape: bf16[32,64], index: 9, kind: input, shape index: {}]
  %s10 = inlined_call_operand.hbm [shape: f32[1,64], index: 10, kind: input, shape index: {}]
  %s11 = inlined_call_operand.hbm [shape: bf16[32,32], index: 11, kind: input, shape index: {}]
  %s12 = inlined_call_operand.hbm [shape: f32[1,32], index: 12, kind: input, shape index: {}]
  %s13 = inlined_call_operand.vmem [shape: bf16[32,32], index: 13, kind: input, shape index: {}]
  %s14 = inlined_call_operand.vmem [shape: f32[1,32], index: 14, kind: input, shape index: {}]
  %s15 = inlined_call_operand.vmem [shape: f32[1,32], index: 15, kind: input, shape index: {}]
  %s16 = inlined_call_operand.vmem [shape: f32[1,32], index: 16, kind: input, shape index: {}]
  %s17 = inlined_call_operand.hbm [shape: f32[2,16,32], index: 17, kind: output, shape index: {0}]
  %s18 = inlined_call_operand.hbm [shape: f32[2,8,32], index: 18, kind: output, shape index: {1}]
  %19 = xla_tuple %s17, %s18
  %s20 = sld [smem:[#allocation0]]
  $region156: #{tpu_custom_call.1} parent=0
    _
  %s22 = ssub.s32 1, %s20
  %s23 = scalar_select 0, %s22, %s20
  $region1: #{tpu_custom_call.1} parent=0
    #allocation10 [shape = 'u8[16384]{0}', space=vmem, size = 0x4000, scoped, tag = 'input window, operand 0']
    #allocation11 [shape = 's32[2]{0}', space=sflag, size = 0x8, scoped, tag = 'scoped memory for tpu_custom_call.1']
    #allocation12 [shape = 's32[2]{0}', space=sflag, size = 0x8, scoped, tag = 'scoped memory for tpu_custom_call.1']
    #allocation13 [shape = 'u8[8192]{0}', space=vmem, size = 0x2000, scoped, tag = 'input window, operand 1']
    #allocation14 [shape = 's32[2]{0}', space=sflag, size = 0x8, scoped, tag = 'scoped memory for tpu_custom_call.1']
    #allocation15 [shape = 'u8[1024]{0}', space=vmem, size = 0x400, scoped, tag = 'input window, operand 2']
    #allocation16 [shape = 'u8[512]{0}', space=vmem, size = 0x400, scoped, tag = 'input window, operand 4, single buffered']
    #allocation17 [shape = 's32[1]{0}', space=sflag, size = 0x4, scoped, tag = 'scoped memory for tpu_custom_call.1']
    #allocation18 [shape = 'u8[512]{0}', space=vmem, size = 0x400, scoped, tag = 'input window, operand 5, single buffered']
    #allocation19 [shape = 'u8[512]{0}', space=vmem, size = 0x400, scoped, tag = 'input window, operand 6, single buffered']
    #allocation20 [shape = 's32[1]{0}', space=sflag, size = 0x4, scoped, tag = 'scoped memory for tpu_custom_call.1']
    #allocation21 [shape = 'u8[512]{0}', space=vmem, size = 0x400, scoped, tag = 'input window, operand 8, single buffered']
    #allocation22 [shape = 'u8[512]{0}', space=vmem, size = 0x400, scoped, tag = 'input window, operand 10, single buffered']
    #allocation23 [shape = 's32[1]{0}', space=sflag, size = 0x4, scoped, tag = 'scoped memory for tpu_custom_call.1']
    #allocation24 [shape = 'u8[8192]{0}', space=vmem, size = 0x2000, scoped, tag = 'input window, operand 11, single buffered']
    #allocation25 [shape = 'u8[512]{0}', space=vmem, size = 0x400, scoped, tag = 'input window, operand 12, single buffered']
    #allocation26 [shape = 's32[1]{0}', space=sflag, size = 0x4, scoped, tag = 'scoped memory for tpu_custom_call.1']
    #allocation27 [shape = 'u8[16384]{0}', space=vmem, size = 0x4000, scoped, tag = 'output window, operand 0']
    #allocation28 [shape = 'u8[8192]{0}', space=vmem, size = 0x2000, scoped, tag = 'output window, operand 1']
    #allocation29 [shape = 's32[2]{0}', space=sflag, size = 0x8, scoped, tag = 'scoped memory for tpu_custom_call.1']
    %24 = vsyncpa [#allocation11], 0
    %s25 = scalar_lea.sflag [#allocation11], 1
    %26 = vsyncpa %s25, 0
    %27 = vsyncpa [#allocation14], 0
    %s28 = scalar_lea.sflag [#allocation14], 1
    %29 = vsyncpa %s28, 0
    %30 = vsyncpa [#allocation17], 0
    %31 = vsyncpa [#allocation20], 0
    %32 = vsyncpa [#allocation23], 0
    %33 = vsyncpa [#allocation26], 0
    %34 = vsyncpa [#allocation12], 0
    %s35 = scalar_lea.sflag [#allocation12], 1
    %36 = vsyncpa %s35, 0
    %37 = vsyncpa [#allocation29], 0
    %s38 = scalar_lea.sflag [#allocation29], 1
    %39 = vsyncpa %s38, 0
    loop: start=0, step=1, limit=4
    $region2: #{tpu_custom_call.1} parent=1 // loop_pre_header
      _
    $region3: #{tpu_custom_call.1} parent=1 // loop_header
      %s41 = sphi 0, %s45
      %p42 = scmp.ge.s32.totalorder %s41, 4
      %s51 = sphi 0, %s53
      %s54 = sphi 0, %s51
      %s55 = sphi 0, %s54
      %s71 = sphi 0, %s55
      %s77 = sphi 0, %s79
      %s80 = sphi 0, %s77
      %s81 = sphi 0, %s80
      %s97 = sphi 0, %s81
      %s103 = sphi 0, %s105
      %s106 = sphi 0, %s103
      %s107 = sphi 0, %s106
      %s123 = sphi 0, %s107
      %s127 = sphi 0, %s127
      %s129 = sphi 0, %s127
      %s130 = sphi 0, %s129
      %s144 = sphi 0, %s130
      %s148 = sphi 0, %s148
      %s150 = sphi 0, %s148
      %s151 = sphi 0, %s150
      %s165 = sphi 0, %s151
      %s169 = sphi 0, %s169
      %s171 = sphi 0, %s169
      %s172 = sphi 0, %s171
      %s186 = sphi 0, %s172
      %s190 = sphi 0, %s190
      %s192 = sphi 0, %s190
      %s193 = sphi 0, %s192
      %s207 = sphi 0, %s193
      %s211 = sphi 0, %s211
      %s213 = sphi 0, %s211
      %s214 = sphi 0, %s213
      %s228 = sphi 0, %s214
      %s232 = sphi 0, %s232
      %s234 = sphi 0, %s232
      %s235 = sphi 0, %s234
      %s249 = sphi 0, %s235
      %s253 = sphi 0, %s253
      %s255 = sphi 0, %s253
      %s256 = sphi 0, %s255
      %s270 = sphi 0, %s256
      %s274 = sphi 0, %s274
      %s276 = sphi 0, %s274
      %s277 = sphi 0, %s276
      %s291 = sphi 0, %s277
      %s295 = sphi 0, %s295
      %s297 = sphi 0, %s295
      %s298 = sphi 0, %s297
      %s312 = sphi 0, %s298
      %s316 = sphi 0, %s316
      %s318 = sphi 0, %s316
      %s319 = sphi 0, %s318
      %s333 = sphi 0, %s319
      %s337 = sphi 0, %s337
      %s339 = sphi 0, %s337
      %s340 = sphi 0, %s339
      %s354 = sphi 0, %s340
      %s358 = sphi 0, %s358
      %s360 = sphi 0, %s358
      %s361 = sphi 0, %s360
      %s375 = sphi 0, %s361
      %s379 = sphi 0, %s379
      %s381 = sphi 0, %s379
      %s382 = sphi 0, %s381
      %s396 = sphi 0, %s382
      %s400 = sphi 0, %s400
      %s402 = sphi 0, %s400
      %s403 = sphi 0, %s402
      %s417 = sphi 0, %s403
      %s423 = sphi 0, %s425
      %s426 = sphi 0, %s423
      %s427 = sphi 0, %s426
      %s443 = sphi 0, %s427
      %s449 = sphi 0, %s451
      %s452 = sphi 0, %s449
      %s453 = sphi 0, %s452
      %s469 = sphi 0, %s453
    $region4: #{tpu_custom_call.1} parent=1 // loop_header_branch
      %44 = sbr.rel (%p42) target = $region8
    $region5: #{tpu_custom_call.1} parent=1 // loop_body
      %s46 = ssub.s32 %s41, 1
      %s47 = ssub.s32 %s41, 2
      %s48 = sadd.s32 %s41, 1
      %s49 = ssub.s32 %s41, %s48
      %p50 = scmp.eq.s32.totalorder %s49, 0
      %s52 = sadd.s32 %s51, 1
      %s53 = scalar_select %p50, %s51, %s52
      %p56 = pneg %p50
      %p57 = scmp.eq.s32.totalorder %s41, 1
      %p58 = por %p56, %p57
      %p59 = scmp.ne.s32.totalorder %s51, %s54
      %p60 = scmp.eq.s32.totalorder %s41, 0
      %p61 = por %p59, %p60
      %p62 = scmp.ne.s32.totalorder %s51, %s54
      %p63 = scmp.eq.s32.totalorder %s46, 1
      %p64 = por %p62, %p63
      %p65 = scmp.ne.s32.totalorder %s54, %s55
      %p66 = scmp.eq.s32.totalorder %s46, 0
      %p67 = por %p65, %p66
      %p68 = scmp.ne.s32.totalorder %s54, %s55
      %p69 = scmp.eq.s32.totalorder %s47, 1
      %p70 = por %p68, %p69
      %p72 = scmp.ne.s32.totalorder %s55, %s71
      %p73 = scmp.eq.s32.totalorder %s47, 0
      %p74 = por %p72, %p73
      %s75 = ssub.s32 %s41, %s48
      %p76 = scmp.eq.s32.totalorder %s75, 0
      %s78 = sadd.s32 %s77, 1
      %s79 = scalar_select %p76, %s77, %s78
      %p82 = pneg %p76
      %p83 = scmp.eq.s32.totalorder %s41, 1
      %p84 = por %p82, %p83
      %p85 = scmp.ne.s32.totalorder %s77, %s80
      %p86 = scmp.eq.s32.totalorder %s41, 0
      %p87 = por %p85, %p86
      %p88 = scmp.ne.s32.totalorder %s77, %s80
      %p89 = scmp.eq.s32.totalorder %s46, 1
      %p90 = por %p88, %p89
      %p91 = scmp.ne.s32.totalorder %s80, %s81
      %p92 = scmp.eq.s32.totalorder %s46, 0
      %p93 = por %p91, %p92
      %p94 = scmp.ne.s32.totalorder %s80, %s81
      %p95 = scmp.eq.s32.totalorder %s47, 1
      %p96 = por %p94, %p95
      %p98 = scmp.ne.s32.totalorder %s81, %s97
      %p99 = scmp.eq.s32.totalorder %s47, 0
      %p100 = por %p98, %p99
      %s101 = ssub.s32 %s41, %s48
      %p102 = scmp.eq.s32.totalorder %s101, 0
      %s104 = sadd.s32 %s103, 1
      %s105 = scalar_select %p102, %s103, %s104
      %p108 = pneg %p102
      %p109 = scmp.eq.s32.totalorder %s41, 1
      %p110 = por %p108, %p109
      %p111 = scmp.ne.s32.totalorder %s103, %s106
      %p112 = scmp.eq.s32.totalorder %s41, 0
      %p113 = por %p111, %p112
      %p114 = scmp.ne.s32.totalorder %s103, %s106
      %p115 = scmp.eq.s32.totalorder %s46, 1
      %p116 = por %p114, %p115
      %p117 = scmp.ne.s32.totalorder %s106, %s107
      %p118 = scmp.eq.s32.totalorder %s46, 0
      %p119 = por %p117, %p118
      %p120 = scmp.ne.s32.totalorder %s106, %s107
      %p121 = scmp.eq.s32.totalorder %s47, 1
      %p122 = por %p120, %p121
      %p124 = scmp.ne.s32.totalorder %s107, %s123
      %p125 = scmp.eq.s32.totalorder %s47, 0
      %p126 = por %p124, %p125
      %s128 = sadd.s32 %s127, 1
      %p131 = scmp.eq.s32.totalorder %s41, 1
      %p132 = scmp.ne.s32.totalorder %s127, %s129
      %p133 = scmp.eq.s32.totalorder %s41, 0
      %p134 = por %p132, %p133
      %p135 = scmp.ne.s32.totalorder %s127, %s129
      %p136 = scmp.eq.s32.totalorder %s46, 1
      %p137 = por %p135, %p136
      %p138 = scmp.ne.s32.totalorder %s129, %s130
      %p139 = scmp.eq.s32.totalorder %s46, 0
      %p140 = por %p138, %p139
      %p141 = scmp.ne.s32.totalorder %s129, %s130
      %p142 = scmp.eq.s32.totalorder %s47, 1
      %p143 = por %p141, %p142
      %p145 = scmp.ne.s32.totalorder %s130, %s144
      %p146 = scmp.eq.s32.totalorder %s47, 0
      %p147 = por %p145, %p146
      %s149 = sadd.s32 %s148, 1
      %p152 = scmp.eq.s32.totalorder %s41, 1
      %p153 = scmp.ne.s32.totalorder %s148, %s150
      %p154 = scmp.eq.s32.totalorder %s41, 0
      %p155 = por %p153, %p154
      %p156 = scmp.ne.s32.totalorder %s148, %s150
      %p157 = scmp.eq.s32.totalorder %s46, 1
      %p158 = por %p156, %p157
      %p159 = scmp.ne.s32.totalorder %s150, %s151
      %p160 = scmp.eq.s32.totalorder %s46, 0
      %p161 = por %p159, %p160
      %p162 = scmp.ne.s32.totalorder %s150, %s151
      %p163 = scmp.eq.s32.totalorder %s47, 1
      %p164 = por %p162, %p163
      %p166 = scmp.ne.s32.totalorder %s151, %s165
      %p167 = scmp.eq.s32.totalorder %s47, 0
      %p168 = por %p166, %p167
      %s170 = sadd.s32 %s169, 1
      %p173 = scmp.eq.s32.totalorder %s41, 1
      %p174 = scmp.ne.s32.totalorder %s169, %s171
      %p175 = scmp.eq.s32.totalorder %s41, 0
      %p176 = por %p174, %p175
      %p177 = scmp.ne.s32.totalorder %s169, %s171
      %p178 = scmp.eq.s32.totalorder %s46, 1
      %p179 = por %p177, %p178
      %p180 = scmp.ne.s32.totalorder %s171, %s172
      %p181 = scmp.eq.s32.totalorder %s46, 0
      %p182 = por %p180, %p181
      %p183 = scmp.ne.s32.totalorder %s171, %s172
      %p184 = scmp.eq.s32.totalorder %s47, 1
      %p185 = por %p183, %p184
      %p187 = scmp.ne.s32.totalorder %s172, %s186
      %p188 = scmp.eq.s32.totalorder %s47, 0
      %p189 = por %p187, %p188
      %s191 = sadd.s32 %s190, 1
      %p194 = scmp.eq.s32.totalorder %s41, 1
      %p195 = scmp.ne.s32.totalorder %s190, %s192
      %p196 = scmp.eq.s32.totalorder %s41, 0
      %p197 = por %p195, %p196
      %p198 = scmp.ne.s32.totalorder %s190, %s192
      %p199 = scmp.eq.s32.totalorder %s46, 1
      %p200 = por %p198, %p199
      %p201 = scmp.ne.s32.totalorder %s192, %s193
      %p202 = scmp.eq.s32.totalorder %s46, 0
      %p203 = por %p201, %p202
      %p204 = scmp.ne.s32.totalorder %s192, %s193
      %p205 = scmp.eq.s32.totalorder %s47, 1
      %p206 = por %p204, %p205
      %p208 = scmp.ne.s32.totalorder %s193, %s207
      %p209 = scmp.eq.s32.totalorder %s47, 0
      %p210 = por %p208, %p209
      %s212 = sadd.s32 %s211, 1
      %p215 = scmp.eq.s32.totalorder %s41, 1
      %p216 = scmp.ne.s32.totalorder %s211, %s213
      %p217 = scmp.eq.s32.totalorder %s41, 0
      %p218 = por %p216, %p217
      %p219 = scmp.ne.s32.totalorder %s211, %s213
      %p220 = scmp.eq.s32.totalorder %s46, 1
      %p221 = por %p219, %p220
      %p222 = scmp.ne.s32.totalorder %s213, %s214
      %p223 = scmp.eq.s32.totalorder %s46, 0
      %p224 = por %p222, %p223
      %p225 = scmp.ne.s32.totalorder %s213, %s214
      %p226 = scmp.eq.s32.totalorder %s47, 1
      %p227 = por %p225, %p226
      %p229 = scmp.ne.s32.totalorder %s214, %s228
      %p230 = scmp.eq.s32.totalorder %s47, 0
      %p231 = por %p229, %p230
      %s233 = sadd.s32 %s232, 1
      %p236 = scmp.eq.s32.totalorder %s41, 1
      %p237 = scmp.ne.s32.totalorder %s232, %s234
      %p238 = scmp.eq.s32.totalorder %s41, 0
      %p239 = por %p237, %p238
      %p240 = scmp.ne.s32.totalorder %s232, %s234
      %p241 = scmp.eq.s32.totalorder %s46, 1
      %p242 = por %p240, %p241
      %p243 = scmp.ne.s32.totalorder %s234, %s235
      %p244 = scmp.eq.s32.totalorder %s46, 0
      %p245 = por %p243, %p244
      %p246 = scmp.ne.s32.totalorder %s234, %s235
      %p247 = scmp.eq.s32.totalorder %s47, 1
      %p248 = por %p246, %p247
      %p250 = scmp.ne.s32.totalorder %s235, %s249
      %p251 = scmp.eq.s32.totalorder %s47, 0
      %p252 = por %p250, %p251
      %s254 = sadd.s32 %s253, 1
      %p257 = scmp.eq.s32.totalorder %s41, 1
      %p258 = scmp.ne.s32.totalorder %s253, %s255
      %p259 = scmp.eq.s32.totalorder %s41, 0
      %p260 = por %p258, %p259
      %p261 = scmp.ne.s32.totalorder %s253, %s255
      %p262 = scmp.eq.s32.totalorder %s46, 1
      %p263 = por %p261, %p262
      %p264 = scmp.ne.s32.totalorder %s255, %s256
      %p265 = scmp.eq.s32.totalorder %s46, 0
      %p266 = por %p264, %p265
      %p267 = scmp.ne.s32.totalorder %s255, %s256
      %p268 = scmp.eq.s32.totalorder %s47, 1
      %p269 = por %p267, %p268
      %p271 = scmp.ne.s32.totalorder %s256, %s270
      %p272 = scmp.eq.s32.totalorder %s47, 0
      %p273 = por %p271, %p272
      %s275 = sadd.s32 %s274, 1
      %p278 = scmp.eq.s32.totalorder %s41, 1
      %p279 = scmp.ne.s32.totalorder %s274, %s276
      %p280 = scmp.eq.s32.totalorder %s41, 0
      %p281 = por %p279, %p280
      %p282 = scmp.ne.s32.totalorder %s274, %s276
      %p283 = scmp.eq.s32.totalorder %s46, 1
      %p284 = por %p282, %p283
      %p285 = scmp.ne.s32.totalorder %s276, %s277
      %p286 = scmp.eq.s32.totalorder %s46, 0
      %p287 = por %p285, %p286
      %p288 = scmp.ne.s32.totalorder %s276, %s277
      %p289 = scmp.eq.s32.totalorder %s47, 1
      %p290 = por %p288, %p289
      %p292 = scmp.ne.s32.totalorder %s277, %s291
      %p293 = scmp.eq.s32.totalorder %s47, 0
      %p294 = por %p292, %p293
      %s296 = sadd.s32 %s295, 1
      %p299 = scmp.eq.s32.totalorder %s41, 1
      %p300 = scmp.ne.s32.totalorder %s295, %s297
      %p301 = scmp.eq.s32.totalorder %s41, 0
      %p302 = por %p300, %p301
      %p303 = scmp.ne.s32.totalorder %s295, %s297
      %p304 = scmp.eq.s32.totalorder %s46, 1
      %p305 = por %p303, %p304
      %p306 = scmp.ne.s32.totalorder %s297, %s298
      %p307 = scmp.eq.s32.totalorder %s46, 0
      %p308 = por %p306, %p307
      %p309 = scmp.ne.s32.totalorder %s297, %s298
      %p310 = scmp.eq.s32.totalorder %s47, 1
      %p311 = por %p309, %p310
      %p313 = scmp.ne.s32.totalorder %s298, %s312
      %p314 = scmp.eq.s32.totalorder %s47, 0
      %p315 = por %p313, %p314
      %s317 = sadd.s32 %s316, 1
      %p320 = scmp.eq.s32.totalorder %s41, 1
      %p321 = scmp.ne.s32.totalorder %s316, %s318
      %p322 = scmp.eq.s32.totalorder %s41, 0
      %p323 = por %p321, %p322
      %p324 = scmp.ne.s32.totalorder %s316, %s318
      %p325 = scmp.eq.s32.totalorder %s46, 1
      %p326 = por %p324, %p325
      %p327 = scmp.ne.s32.totalorder %s318, %s319
      %p328 = scmp.eq.s32.totalorder %s46, 0
      %p329 = por %p327, %p328
      %p330 = scmp.ne.s32.totalorder %s318, %s319
      %p331 = scmp.eq.s32.totalorder %s47, 1
      %p332 = por %p330, %p331
      %p334 = scmp.ne.s32.totalorder %s319, %s333
      %p335 = scmp.eq.s32.totalorder %s47, 0
      %p336 = por %p334, %p335
      %s338 = sadd.s32 %s337, 1
      %p341 = scmp.eq.s32.totalorder %s41, 1
      %p342 = scmp.ne.s32.totalorder %s337, %s339
      %p343 = scmp.eq.s32.totalorder %s41, 0
      %p344 = por %p342, %p343
      %p345 = scmp.ne.s32.totalorder %s337, %s339
      %p346 = scmp.eq.s32.totalorder %s46, 1
      %p347 = por %p345, %p346
      %p348 = scmp.ne.s32.totalorder %s339, %s340
      %p349 = scmp.eq.s32.totalorder %s46, 0
      %p350 = por %p348, %p349
      %p351 = scmp.ne.s32.totalorder %s339, %s340
      %p352 = scmp.eq.s32.totalorder %s47, 1
      %p353 = por %p351, %p352
      %p355 = scmp.ne.s32.totalorder %s340, %s354
      %p356 = scmp.eq.s32.totalorder %s47, 0
      %p357 = por %p355, %p356
      %s359 = sadd.s32 %s358, 1
      %p362 = scmp.eq.s32.totalorder %s41, 1
      %p363 = scmp.ne.s32.totalorder %s358, %s360
      %p364 = scmp.eq.s32.totalorder %s41, 0
      %p365 = por %p363, %p364
      %p366 = scmp.ne.s32.totalorder %s358, %s360
      %p367 = scmp.eq.s32.totalorder %s46, 1
      %p368 = por %p366, %p367
      %p369 = scmp.ne.s32.totalorder %s360, %s361
      %p370 = scmp.eq.s32.totalorder %s46, 0
      %p371 = por %p369, %p370
      %p372 = scmp.ne.s32.totalorder %s360, %s361
      %p373 = scmp.eq.s32.totalorder %s47, 1
      %p374 = por %p372, %p373
      %p376 = scmp.ne.s32.totalorder %s361, %s375
      %p377 = scmp.eq.s32.totalorder %s47, 0
      %p378 = por %p376, %p377
      %s380 = sadd.s32 %s379, 1
      %p383 = scmp.eq.s32.totalorder %s41, 1
      %p384 = scmp.ne.s32.totalorder %s379, %s381
      %p385 = scmp.eq.s32.totalorder %s41, 0
      %p386 = por %p384, %p385
      %p387 = scmp.ne.s32.totalorder %s379, %s381
      %p388 = scmp.eq.s32.totalorder %s46, 1
      %p389 = por %p387, %p388
      %p390 = scmp.ne.s32.totalorder %s381, %s382
      %p391 = scmp.eq.s32.totalorder %s46, 0
      %p392 = por %p390, %p391
      %p393 = scmp.ne.s32.totalorder %s381, %s382
      %p394 = scmp.eq.s32.totalorder %s47, 1
      %p395 = por %p393, %p394
      %p397 = scmp.ne.s32.totalorder %s382, %s396
      %p398 = scmp.eq.s32.totalorder %s47, 0
      %p399 = por %p397, %p398
      %s401 = sadd.s32 %s400, 1
      %p404 = scmp.eq.s32.totalorder %s41, 1
      %p405 = scmp.ne.s32.totalorder %s400, %s402
      %p406 = scmp.eq.s32.totalorder %s41, 0
      %p407 = por %p405, %p406
      %p408 = scmp.ne.s32.totalorder %s400, %s402
      %p409 = scmp.eq.s32.totalorder %s46, 1
      %p410 = por %p408, %p409
      %p411 = scmp.ne.s32.totalorder %s402, %s403
      %p412 = scmp.eq.s32.totalorder %s46, 0
      %p413 = por %p411, %p412
      %p414 = scmp.ne.s32.totalorder %s402, %s403
      %p415 = scmp.eq.s32.totalorder %s47, 1
      %p416 = por %p414, %p415
      %p418 = scmp.ne.s32.totalorder %s403, %s417
      %p419 = scmp.eq.s32.totalorder %s47, 0
      %p420 = por %p418, %p419
      %s421 = ssub.s32 %s41, %s48
      %p422 = scmp.eq.s32.totalorder %s421, 0
      %s424 = sadd.s32 %s423, 1
      %s425 = scalar_select %p422, %s423, %s424
      %p428 = pneg %p422
      %p429 = scmp.eq.s32.totalorder %s41, 1
      %p430 = por %p428, %p429
      %p431 = scmp.ne.s32.totalorder %s423, %s426
      %p432 = scmp.eq.s32.totalorder %s41, 0
      %p433 = por %p431, %p432
      %p434 = scmp.ne.s32.totalorder %s423, %s426
      %p435 = scmp.eq.s32.totalorder %s46, 1
      %p436 = por %p434, %p435
      %p437 = scmp.ne.s32.totalorder %s426, %s427
      %p438 = scmp.eq.s32.totalorder %s46, 0
      %p439 = por %p437, %p438
      %p440 = scmp.ne.s32.totalorder %s426, %s427
      %p441 = scmp.eq.s32.totalorder %s47, 1
      %p442 = por %p440, %p441
      %p444 = scmp.ne.s32.totalorder %s427, %s443
      %p445 = scmp.eq.s32.totalorder %s47, 0
      %p446 = por %p444, %p445
      %s447 = ssub.s32 %s41, %s48
      %p448 = scmp.eq.s32.totalorder %s447, 0
      %s450 = sadd.s32 %s449, 1
      %s451 = scalar_select %p448, %s449, %s450
      %p454 = pneg %p448
      %p455 = scmp.eq.s32.totalorder %s41, 1
      %p456 = por %p454, %p455
      %p457 = scmp.ne.s32.totalorder %s449, %s452
      %p458 = scmp.eq.s32.totalorder %s41, 0
      %p459 = por %p457, %p458
      %p460 = scmp.ne.s32.totalorder %s449, %s452
      %p461 = scmp.eq.s32.totalorder %s46, 1
      %p462 = por %p460, %p461
      %p463 = scmp.ne.s32.totalorder %s452, %s453
      %p464 = scmp.eq.s32.totalorder %s46, 0
      %p465 = por %p463, %p464
      %p466 = scmp.ne.s32.totalorder %s452, %s453
      %p467 = scmp.eq.s32.totalorder %s47, 1
      %p468 = por %p466, %p467
      %p470 = scmp.ne.s32.totalorder %s453, %s469
      %p471 = scmp.eq.s32.totalorder %s47, 0
      %p472 = por %p470, %p471
      %p473 = scmp.le.s32.totalorder 1, %s41
      %p474 = scmp.lt.s32.totalorder %s41, 3
      %p475 = pnand %p473, %p474
      %p476 = pneg %p475
      // Predicated region
      $region9: #{tpu_custom_call.1} parent=5 // pred_check
        _
      $region10: #{tpu_custom_call.1} parent=5 // pred_check_branch
        %478 = sbr.rel (%p475) target = $region12
      $region11: #{tpu_custom_call.1} parent=5 // pred_region
        %s479 = ssub.s32 %s41, 1
        // Predicated region
        $region13: #{tpu_custom_call.1} parent=11 // pred_check
          %p480 = pneg %p140
        $region14: #{tpu_custom_call.1} parent=11 // pred_check_branch
          %482 = sbr.rel (%p480) target = $region16
        $region15: #{tpu_custom_call.1} parent=11 // pred_region
          _
        $region16: #{tpu_custom_call.1} parent=11 // pred_fallthru
          _
        // Predicated region
        $region17: #{tpu_custom_call.1} parent=11 // pred_check
          %p483 = pneg %p161
        $region18: #{tpu_custom_call.1} parent=11 // pred_check_branch
          %485 = sbr.rel (%p483) target = $region20
        $region19: #{tpu_custom_call.1} parent=11 // pred_region
          %s487 = ssub.s32 16, 16
          %488 = vsyncadd [#allocation17], %s487
          %s490 = sshll.u32 [#allocation16], 4
          %s491 = int_to_ptr.vmem [resolvable:$true] %s490
          %493 = dma.hbm_to_vmem [thread:$0]  %s4, 16, %s491, [#allocation17]
        $region20: #{tpu_custom_call.1} parent=11 // pred_fallthru
          _
        // Predicated region
        $region21: #{tpu_custom_call.1} parent=11 // pred_check
          %p494 = pneg %p182
        $region22: #{tpu_custom_call.1} parent=11 // pred_check_branch
          %496 = sbr.rel (%p494) target = $region24
        $region23: #{tpu_custom_call.1} parent=11 // pred_region
          %s498 = ssub.s32 16, 16
          %499 = vsyncadd [#allocation17], %s498
          %s501 = sshll.u32 [#allocation18], 4
          %s502 = int_to_ptr.vmem [resolvable:$true] %s501
          %504 = dma.hbm_to_vmem [thread:$0]  %s5, 16, %s502, [#allocation17]
        $region24: #{tpu_custom_call.1} parent=11 // pred_fallthru
          _
        // Predicated region
        $region25: #{tpu_custom_call.1} parent=11 // pred_check
          %p505 = pneg %p203
        $region26: #{tpu_custom_call.1} parent=11 // pred_check_branch
          %507 = sbr.rel (%p505) target = $region28
        $region27: #{tpu_custom_call.1} parent=11 // pred_region
          %s509 = ssub.s32 16, 16
          %510 = vsyncadd [#allocation20], %s509
          %s512 = sshll.u32 [#allocation19], 4
          %s513 = int_to_ptr.vmem [resolvable:$true] %s512
          %515 = dma.hbm_to_vmem [thread:$0]  %s6, 16, %s513, [#allocation20]
        $region28: #{tpu_custom_call.1} parent=11 // pred_fallthru
          _
        // Predicated region
        $region29: #{tpu_custom_call.1} parent=11 // pred_check
          %p516 = pneg %p224
        $region30: #{tpu_custom_call.1} parent=11 // pred_check_branch
          %518 = sbr.rel (%p516) target = $region32
        $region31: #{tpu_custom_call.1} parent=11 // pred_region
          _
        $region32: #{tpu_custom_call.1} parent=11 // pred_fallthru
          _
        // Predicated region
        $region33: #{tpu_custom_call.1} parent=11 // pred_check
          %p519 = pneg %p245
        $region34: #{tpu_custom_call.1} parent=11 // pred_check_branch
          %521 = sbr.rel (%p519) target = $region36
        $region35: #{tpu_custom_call.1} parent=11 // pred_region
          %s523 = ssub.s32 16, 16
          %524 = vsyncadd [#allocation20], %s523
          %s526 = sshll.u32 [#allocation21], 4
          %s527 = int_to_ptr.vmem [resolvable:$true] %s526
          %529 = dma.hbm_to_vmem [thread:$0]  %s8, 16, %s527, [#allocation20]
        $region36: #{tpu_custom_call.1} parent=11 // pred_fallthru
          _
        // Predicated region
        $region37: #{tpu_custom_call.1} parent=11 // pred_check
          %p530 = pneg %p266
        $region38: #{tpu_custom_call.1} parent=11 // pred_check_branch
          %532 = sbr.rel (%p530) target = $region40
        $region39: #{tpu_custom_call.1} parent=11 // pred_region
          _
        $region40: #{tpu_custom_call.1} parent=11 // pred_fallthru
          _
        // Predicated region
        $region41: #{tpu_custom_call.1} parent=11 // pred_check
          %p533 = pneg %p287
        $region42: #{tpu_custom_call.1} parent=11 // pred_check_branch
          %535 = sbr.rel (%p533) target = $region44
        $region43: #{tpu_custom_call.1} parent=11 // pred_region
          %s537 = ssub.s32 16, 16
          %538 = vsyncadd [#allocation23], %s537
          %s540 = sshll.u32 [#allocation22], 4
          %s541 = int_to_ptr.vmem [resolvable:$true] %s540
          %543 = dma.hbm_to_vmem [thread:$0]  %s10, 16, %s541, [#allocation23]
        $region44: #{tpu_custom_call.1} parent=11 // pred_fallthru
          _
        // Predicated region
        $region45: #{tpu_custom_call.1} parent=11 // pred_check
          %p544 = pneg %p308
        $region46: #{tpu_custom_call.1} parent=11 // pred_check_branch
          %546 = sbr.rel (%p544) target = $region48
        $region47: #{tpu_custom_call.1} parent=11 // pred_region
          %s548 = ssub.s32 256, 256
          %549 = vsyncadd [#allocation23], %s548
          %s550 = sshll.u32 [#allocation24], 4
          %s551 = int_to_ptr.vmem [resolvable:$true] %s550
          %556 = dma.hbm_to_vmem [thread:$0]  %s11, 256, %s551, [#allocation23], 64, 64, 4
        $region48: #{tpu_custom_call.1} parent=11 // pred_fallthru
          _
        // Predicated region
        $region49: #{tpu_custom_call.1} parent=11 // pred_check
          %p557 = pneg %p329
        $region50: #{tpu_custom_call.1} parent=11 // pred_check_branch
          %559 = sbr.rel (%p557) target = $region52
        $region51: #{tpu_custom_call.1} parent=11 // pred_region
          %s561 = ssub.s32 16, 16
          %562 = vsyncadd [#allocation26], %s561
          %s564 = sshll.u32 [#allocation25], 4
          %s565 = int_to_ptr.vmem [resolvable:$true] %s564
          %567 = dma.hbm_to_vmem [thread:$0]  %s12, 16, %s565, [#allocation26]
        $region52: #{tpu_custom_call.1} parent=11 // pred_fallthru
          _
        // Predicated region
        $region53: #{tpu_custom_call.1} parent=11 // pred_check
          %p568 = pneg %p350
        $region54: #{tpu_custom_call.1} parent=11 // pred_check_branch
          %570 = sbr.rel (%p568) target = $region56
        $region55: #{tpu_custom_call.1} parent=11 // pred_region
          _
        $region56: #{tpu_custom_call.1} parent=11 // pred_fallthru
          _
        // Predicated region
        $region57: #{tpu_custom_call.1} parent=11 // pred_check
          %p571 = pneg %p371
        $region58: #{tpu_custom_call.1} parent=11 // pred_check_branch
          %573 = sbr.rel (%p571) target = $region60
        $region59: #{tpu_custom_call.1} parent=11 // pred_region
          _
        $region60: #{tpu_custom_call.1} parent=11 // pred_fallthru
          _
        // Predicated region
        $region61: #{tpu_custom_call.1} parent=11 // pred_check
          %p574 = pneg %p392
        $region62: #{tpu_custom_call.1} parent=11 // pred_check_branch
          %576 = sbr.rel (%p574) target = $region64
        $region63: #{tpu_custom_call.1} parent=11 // pred_region
          _
        $region64: #{tpu_custom_call.1} parent=11 // pred_fallthru
          _
        // Predicated region
        $region65: #{tpu_custom_call.1} parent=11 // pred_check
          %p577 = pneg %p413
        $region66: #{tpu_custom_call.1} parent=11 // pred_check_branch
          %579 = sbr.rel (%p577) target = $region68
        $region67: #{tpu_custom_call.1} parent=11 // pred_region
          _
        $region68: #{tpu_custom_call.1} parent=11 // pred_fallthru
          _
      $region12: #{tpu_custom_call.1} parent=5 // pred_fallthru
        _
      %p580 = scmp.lt.s32.totalorder %s41, 2
      // Predicated region
      $region69: #{tpu_custom_call.1} parent=5 // pred_check
        %p581 = pneg %p580
      $region70: #{tpu_custom_call.1} parent=5 // pred_check_branch
        %583 = sbr.rel (%p581) target = $region72
      $region71: #{tpu_custom_call.1} parent=5 // pred_region
        // Predicated region
        $region73: #{tpu_custom_call.1} parent=71 // pred_check
          %p584 = pneg %p61
        $region74: #{tpu_custom_call.1} parent=71 // pred_check_branch
          %586 = sbr.rel (%p584) target = $region76
        $region75: #{tpu_custom_call.1} parent=71 // pred_region
          %s587 = sand.u32 %s51, 1
          %s588 = scalar_lea.sflag [#allocation11], %s587
          %s589 = sand.u32 %s51, 1
          %s590 = smul.addr %s589, 16
          %s591 = scalar_lea.vmem [#allocation10], %s590
          %s593 = ssub.s32 256, 256
          %594 = vsyncadd %s588, %s593
          %s595 = smul.addr %s41, 2
          %s596 = smul.addr %s595, 128
          %s597 = scalar_lea.hbm %s0, %s596
          %s598 = sshll.u32 %s591, 4
          %s599 = int_to_ptr.vmem [resolvable:$true] %s598
          %604 = dma.hbm_to_vmem [thread:$0]  %s597, 256, %s599, %s588, 128, 128, 8
        $region76: #{tpu_custom_call.1} parent=71 // pred_fallthru
          _
        // Predicated region
        $region77: #{tpu_custom_call.1} parent=71 // pred_check
          %p605 = pneg %p87
        $region78: #{tpu_custom_call.1} parent=71 // pred_check_branch
          %607 = sbr.rel (%p605) target = $region80
        $region79: #{tpu_custom_call.1} parent=71 // pred_region
          %s608 = sand.u32 %s41, 1
          %s609 = scalar_lea.sflag [#allocation14], %s608
          %s610 = sand.u32 %s77, 1
          %s611 = smul.addr %s610, 8
          %s612 = scalar_lea.vmem [#allocation13], %s611
          %s614 = ssub.s32 128, 128
          %615 = vsyncadd %s609, %s614
          %s616 = smul.addr %s41, 128
          %s617 = scalar_lea.hbm %s1, %s616
          %s619 = sshll.u32 %s612, 4
          %s620 = int_to_ptr.vmem [resolvable:$true] %s619
          %622 = dma.hbm_to_vmem [thread:$0]  %s617, 128, %s620, %s609
        $region80: #{tpu_custom_call.1} parent=71 // pred_fallthru
          _
        // Predicated region
        $region81: #{tpu_custom_call.1} parent=71 // pred_check
          %p623 = pneg %p113
        $region82: #{tpu_custom_call.1} parent=71 // pred_check_branch
          %625 = sbr.rel (%p623) target = $region84
        $region83: #{tpu_custom_call.1} parent=71 // pred_region
          %s626 = sand.u32 %s41, 1
          %s627 = scalar_lea.sflag [#allocation14], %s626
          %s628 = sand.u32 %s103, 1
          %s629 = scalar_lea.vmem [#allocation15], %s628
          %s631 = ssub.s32 16, 16
          %632 = vsyncadd %s627, %s631
          %s633 = smul.addr %s41, 16
          %s634 = scalar_lea.hbm %s2, %s633
          %s636 = sshll.u32 %s629, 4
          %s637 = int_to_ptr.vmem [resolvable:$true] %s636
          %639 = dma.hbm_to_vmem [thread:$0]  %s634, 16, %s637, %s627
        $region84: #{tpu_custom_call.1} parent=71 // pred_fallthru
          _
      $region72: #{tpu_custom_call.1} parent=5 // pred_fallthru
        _
      %p640 = scmp.le.s32.totalorder 1, %s41
      %p641 = scmp.lt.s32.totalorder %s41, 3
      %p642 = pnand %p640, %p641
      %p643 = pneg %p642
      // Predicated region
      $region85: #{tpu_custom_call.1} parent=5 // pred_check
        _
      $region86: #{tpu_custom_call.1} parent=5 // pred_check_branch
        %645 = sbr.rel (%p642) target = $region88
      $region87: #{tpu_custom_call.1} parent=5 // pred_region
        %s646 = ssub.s32 %s41, 1
        %s647 = sand.u32 %s54, 1
        %s648 = scalar_lea.sflag [#allocation11], %s647
        %s649 = sand.u32 %s54, 1
        %s650 = smul.addr %s649, 16
        %s651 = scalar_lea.vmem [#allocation10], %s650
        // Predicated region
        $region89: #{tpu_custom_call.1} parent=87 // pred_check
          %p652 = pneg %p67
        $region90: #{tpu_custom_call.1} parent=87 // pred_check_branch
          %654 = sbr.rel (%p652) target = $region92
        $region91: #{tpu_custom_call.1} parent=87 // pred_region
          %655 = dma.done %s648, 256
        $region92: #{tpu_custom_call.1} parent=87 // pred_fallthru
          _
        %s656 = sand.u32 %s46, 1
        %s657 = scalar_lea.sflag [#allocation14], %s656
        %s658 = sand.u32 %s80, 1
        %s659 = smul.addr %s658, 8
        %s660 = scalar_lea.vmem [#allocation13], %s659
        // Predicated region
        $region93: #{tpu_custom_call.1} parent=87 // pred_check
          %p661 = pneg %p93
        $region94: #{tpu_custom_call.1} parent=87 // pred_check_branch
          %663 = sbr.rel (%p661) target = $region96
        $region95: #{tpu_custom_call.1} parent=87 // pred_region
          %664 = dma.done %s657, 128
        $region96: #{tpu_custom_call.1} parent=87 // pred_fallthru
          _
        %s665 = sand.u32 %s46, 1
        %s666 = scalar_lea.sflag [#allocation14], %s665
        %s667 = sand.u32 %s106, 1
        %s668 = scalar_lea.vmem [#allocation15], %s667
        // Predicated region
        $region97: #{tpu_custom_call.1} parent=87 // pred_check
          %p669 = pneg %p119
        $region98: #{tpu_custom_call.1} parent=87 // pred_check_branch
          %671 = sbr.rel (%p669) target = $region100
        $region99: #{tpu_custom_call.1} parent=87 // pred_region
          %672 = dma.done %s666, 16
        $region100: #{tpu_custom_call.1} parent=87 // pred_fallthru
          _
        // Predicated region
        $region101: #{tpu_custom_call.1} parent=87 // pred_check
          %p673 = pneg %p161
        $region102: #{tpu_custom_call.1} parent=87 // pred_check_branch
          %675 = sbr.rel (%p673) target = $region104
        $region103: #{tpu_custom_call.1} parent=87 // pred_region
          %676 = dma.done [#allocation17], 16
        $region104: #{tpu_custom_call.1} parent=87 // pred_fallthru
          _
        // Predicated region
        $region105: #{tpu_custom_call.1} parent=87 // pred_check
          %p677 = pneg %p182
        $region106: #{tpu_custom_call.1} parent=87 // pred_check_branch
          %679 = sbr.rel (%p677) target = $region108
        $region107: #{tpu_custom_call.1} parent=87 // pred_region
          %680 = dma.done [#allocation17], 16
        $region108: #{tpu_custom_call.1} parent=87 // pred_fallthru
          _
        // Predicated region
        $region109: #{tpu_custom_call.1} parent=87 // pred_check
          %p681 = pneg %p203
        $region110: #{tpu_custom_call.1} parent=87 // pred_check_branch
          %683 = sbr.rel (%p681) target = $region112
        $region111: #{tpu_custom_call.1} parent=87 // pred_region
          %684 = dma.done [#allocation20], 16
        $region112: #{tpu_custom_call.1} parent=87 // pred_fallthru
          _
        // Predicated region
        $region113: #{tpu_custom_call.1} parent=87 // pred_check
          %p685 = pneg %p245
        $region114: #{tpu_custom_call.1} parent=87 // pred_check_branch
          %687 = sbr.rel (%p685) target = $region116
        $region115: #{tpu_custom_call.1} parent=87 // pred_region
          %688 = dma.done [#allocation20], 16
        $region116: #{tpu_custom_call.1} parent=87 // pred_fallthru
          _
        // Predicated region
        $region117: #{tpu_custom_call.1} parent=87 // pred_check
          %p689 = pneg %p287
        $region118: #{tpu_custom_call.1} parent=87 // pred_check_branch
          %691 = sbr.rel (%p689) target = $region120
        $region119: #{tpu_custom_call.1} parent=87 // pred_region
          %692 = dma.done [#allocation23], 16
        $region120: #{tpu_custom_call.1} parent=87 // pred_fallthru
          _
        // Predicated region
        $region121: #{tpu_custom_call.1} parent=87 // pred_check
          %p693 = pneg %p308
        $region122: #{tpu_custom_call.1} parent=87 // pred_check_branch
          %695 = sbr.rel (%p693) target = $region124
        $region123: #{tpu_custom_call.1} parent=87 // pred_region
          %696 = dma.done [#allocation23], 256
        $region124: #{tpu_custom_call.1} parent=87 // pred_fallthru
          _
        // Predicated region
        $region125: #{tpu_custom_call.1} parent=87 // pred_check
          %p697 = pneg %p329
        $region126: #{tpu_custom_call.1} parent=87 // pred_check_branch
          %699 = sbr.rel (%p697) target = $region128
        $region127: #{tpu_custom_call.1} parent=87 // pred_region
          %700 = dma.done [#allocation26], 16
        $region128: #{tpu_custom_call.1} parent=87 // pred_fallthru
          _
        %s701 = sand.u32 %s54, 1
        %s702 = scalar_lea.sflag [#allocation11], %s701
        %s703 = sand.u32 %s54, 1
        %s704 = smul.addr %s703, 16
        %s705 = scalar_lea.vmem [#allocation10], %s704
        %p706 = pneg %p67
        %p707 = pneg %p64
        %s708 = sand.u32 %s46, 1
        %s709 = scalar_lea.sflag [#allocation14], %s708
        %s710 = sand.u32 %s80, 1
        %s711 = smul.addr %s710, 8
        %s712 = scalar_lea.vmem [#allocation13], %s711
        %p713 = pneg %p93
        %p714 = pneg %p90
        %s715 = sand.u32 %s46, 1
        %s716 = scalar_lea.sflag [#allocation14], %s715
        %s717 = sand.u32 %s106, 1
        %s718 = scalar_lea.vmem [#allocation15], %s717
        %p719 = pneg %p119
        %p720 = pneg %p116
        %p721 = pneg %p140
        %p722 = pneg %p137
        %p723 = pneg %p161
        %p724 = pneg %p158
        %p725 = pneg %p182
        %p726 = pneg %p179
        %p727 = pneg %p203
        %p728 = pneg %p200
        %p729 = pneg %p224
        %p730 = pneg %p221
        %p731 = pneg %p245
        %p732 = pneg %p242
        %p733 = pneg %p266
        %p734 = pneg %p263
        %p735 = pneg %p287
        %p736 = pneg %p284
        %p737 = pneg %p308
        %p738 = pneg %p305
        %p739 = pneg %p329
        %p740 = pneg %p326
        %p741 = pneg %p350
        %p742 = pneg %p347
        %p743 = pneg %p371
        %p744 = pneg %p368
        %p745 = pneg %p392
        %p746 = pneg %p389
        %p747 = pneg %p413
        %p748 = pneg %p410
        %p749 = pneg %p439
        %p750 = pneg %p436
        %s751 = sand.u32 %s426, 1
        %s752 = scalar_lea.sflag [#allocation12], %s751
        %s753 = sand.u32 %s426, 1
        %s754 = smul.addr %s753, 16
        %s755 = scalar_lea.vmem [#allocation27], %s754
        %p756 = pneg %p465
        %p757 = pneg %p462
        %s758 = sand.u32 %s452, 1
        %s759 = scalar_lea.sflag [#allocation29], %s758
        %s760 = sand.u32 %s452, 1
        %s761 = smul.addr %s760, 8
        %s762 = scalar_lea.vmem [#allocation28], %s761
        %v764 = vld [vmem:[%s651] sm:$0xff]
        %v765 = vld [vmem:[%s651 + $0x8] sm:$0xff]
        %v766 = vld [vmem:[%s660] sm:$0xff]
        %v767 = vld [vmem:[%s3] sm:$0x1]
        %v768 = vld [vmem:[#allocation16] sm:$0x1]
        %vm769 = vcmask 261120
        %v770 = vsel %vm769, %v764, 0.0
        %771 = vadd.xlane.f32.xlu0 %v770
        %v772 = vpop.xlane.xlu0 %771
        %v773 = vsel %vm769, %v765, 0.0
        %774 = vadd.xlane.f32.xlu0 %v773
        %v775 = vpop.xlane.xlu0 %774
        %v776 = vrcp.pop 32.0
        %v777 = vmul.f32 %v772, %v776
        %v778 = vmul.f32 %v775, %v776
        %v779 = vsub.f32 %v764, %v777
        %v780 = vsub.f32 %v765, %v778
        %v781 = vmul.f32 %v779, %v779
        %v782 = vmul.f32 %v780, %v780
        %v783 = vsel %vm769, %v781, 0.0
        %784 = vadd.xlane.f32.xlu0 %v783
        %v785 = vpop.xlane.xlu0 %784
        %v786 = vsel %vm769, %v782, 0.0
        %787 = vadd.xlane.f32.xlu0 %v786
        %v788 = vpop.xlane.xlu0 %787
        %v789 = vmul.f32 %v785, %v776
        %v790 = vmul.f32 %v788, %v776
        %v791 = vadd.f32 %v789, 1e-05
        %v792 = vadd.f32 %v790, 1e-05
        %v793 = vrsqrt.pop %v791
        %v794 = vrsqrt.pop %v792
        %v795 = vmul.f32 %v779, %v793
        %v796 = vmul.f32 %v780, %v794
        %v798 = vlaneseq
        %v799 = vshrl.u32 %v798, 7
        %v800 = vsub.s32 0, %v799
        %v801 = vrot.slane %v767, %v800
        %v803 = vmul.f32 %v795, %v801
        %v804 = vmul.f32 %v796, %v801
        %v806 = vlaneseq
        %v807 = vshrl.u32 %v806, 7
        %v808 = vsub.s32 0, %v807
        %v809 = vrot.slane %v768, %v808
        %v811 = vadd.f32 %v803, %v809
        %v812 = vadd.f32 %v804, %v809
        %v813 = vld [vmem:[#allocation18] sm:$0x1]
        %v814 = vld [vmem:[#allocation19] sm:$0x1]
        %v815 = vsel %vm769, %v766, 0.0
        %816 = vadd.xlane.f32.xlu0 %v815
        %v817 = vpop.xlane.xlu0 %816
        %v818 = vmul.f32 %v817, %v776
        %v819 = vsub.f32 %v766, %v818
        %v820 = vmul.f32 %v819, %v819
        %v821 = vsel %vm769, %v820, 0.0
        %822 = vadd.xlane.f32.xlu0 %v821
        %v823 = vpop.xlane.xlu0 %822
        %v824 = vmul.f32 %v823, %v776
        %v825 = vadd.f32 %v824, 1e-05
        %v826 = vrsqrt.pop %v825
        %v827 = vmul.f32 %v819, %v826
        %v829 = vlaneseq
        %v830 = vshrl.u32 %v829, 7
        %v831 = vsub.s32 0, %v830
        %v832 = vrot.slane %v813, %v831
        %v834 = vmul.f32 %v827, %v832
        %v836 = vlaneseq
        %v837 = vshrl.u32 %v836, 7
        %v838 = vsub.s32 0, %v837
        %v839 = vrot.slane %v814, %v838
        %v841 = vadd.f32 %v834, %v839
        %v842 = vpack.c.bf16 %v812, %v811
        %v843 = vld [vmem:[%s7] sm:$0xf]
        %v844 = vld [vmem:[%s7 + $0x4] sm:$0xf]
        %v845 = vld [vmem:[%s7 + $0x8] sm:$0xf]
        %v846 = vld [vmem:[%s7 + $0xc] sm:$0xf]
        %v847 = vld [vmem:[#allocation21] sm:$0x1]
        %v849 = vlaneseq
        %v850 = vshrl.u32 %v849, 7
        %v851 = vsub.s32 0, %v850
        %v852 = vrot.slane %v847, %v851
        %v858 = vunpack.c.l.b16 %v843
        %v859 = vunpack.c.l.b16 %v844
        %v860 = vunpack.c.l.b16 %v845
        %v861 = vunpack.c.l.b16 %v846
        %v862 = vpack.c.b16 %v859, %v858
        %v863 = vpack.c.b16 %v861, %v860
        %v867 = vsel %vm769, %v842, 0
        %869 = vmatprep.subr.bf16.mxu0 0
        %870 = vmatpush1.bf16.msra.mxu0 %v862
        %871 = vmatprep.subr.bf16.mxu0 0
        %872 = vmatpush1.bf16.msra.mxu0 %v863
        %873 = vmatprep.subr.bf16.mxu0 0
        %874 = vmatpush1.bf16.msra.mxu0 0
        %875 = vmatprep.subr.bf16.mxu0 0
        %876 = vmatpush1.bf16.msra.mxu0 0
        %877 = vmatprep.subr.bf16.mxu0 0
        %878 = vmatpush1.bf16.msra.mxu0 0
        %879 = vmatprep.subr.bf16.mxu0 0
        %880 = vmatpush1.bf16.msra.mxu0 0
        %881 = vmatprep.subr.bf16.mxu0 0
        %882 = vmatpush1.bf16.msra.mxu0 0
        %883 = vmatprep.subr.bf16.mxu0 0
        %884 = vmatpush1.bf16.msra.mxu0 0
        %885 = vmatprep.subr.bf16.mxu0 0
        %886 = vmatpush1.bf16.msra.mxu0 0
        %887 = vmatprep.subr.bf16.mxu0 0
        %888 = vmatpush1.bf16.msra.mxu0 0
        %889 = vmatprep.subr.bf16.mxu0 0
        %890 = vmatpush1.bf16.msra.mxu0 0
        %891 = vmatprep.subr.bf16.mxu0 0
        %892 = vmatpush1.bf16.msra.mxu0 0
        %893 = vmatprep.subr.bf16.mxu0 0
        %894 = vmatpush1.bf16.msra.mxu0 0
        %895 = vmatprep.subr.bf16.mxu0 0
        %896 = vmatpush1.bf16.msra.mxu0 0
        %897 = vmatprep.subr.bf16.mxu0 0
        %898 = vmatpush1.bf16.msra.mxu0 0
        %899 = vmatprep.subr.bf16.mxu0 0
        %900 = vmatpush1.bf16.msra.mxu0 0
        %901 = vmatprep.mubr.bf16.mxu0 0
        %902 = vmatmul.mubr.bf16.gmra.mrb[0].mxu0 %v867
        %v903 = vpop.f32.mrb[0].mxu0
        %v904 = vadd.f32 %v852, %v903
        %v905 = vpop.f32.mrb[0].mxu0
        %v906 = vpop.f32.mrb[0].mxu0
        %v907 = vadd.f32 %v852, %v906
        %v908 = vpop.f32.mrb[0].mxu0
        %909 = vdwg.mxu0
        %v910 = vpack.c.bf16 %v907, %v904
        %v911 = vpack.c.bf16 %v841, %v841
        %v912 = vld [vmem:[%s9] sm:$0xf]
        %v913 = vld [vmem:[%s9 + $0x4] sm:$0xf]
        %v914 = vld [vmem:[%s9 + $0x8] sm:$0xf]
        %v915 = vld [vmem:[%s9 + $0xc] sm:$0xf]
        %v916 = vld [vmem:[#allocation22] sm:$0x1]
        %v918 = vlaneseq
        %v919 = vshrl.u32 %v918, 7
        %v920 = vsub.s32 0, %v919
        %v921 = vrot.slane %v916, %v920
        %v927 = vunpack.c.l.b16 %v912
        %v928 = vunpack.c.l.b16 %v913
        %v929 = vunpack.c.l.b16 %v914
        %v930 = vunpack.c.l.b16 %v915
        %v931 = vpack.c.b16 %v928, %v927
        %v932 = vpack.c.b16 %v930, %v929
        %v936 = vsel %vm769, %v911, 0
        %938 = vmatprep.subr.bf16.mxu0 0
        %939 = vmatpush1.bf16.msra.mxu0 %v931
        %940 = vmatprep.subr.bf16.mxu0 0
        %941 = vmatpush1.bf16.msra.mxu0 %v932
        %942 = vmatprep.subr.bf16.mxu0 0
        %943 = vmatpush1.bf16.msra.mxu0 0
        %944 = vmatprep.subr.bf16.mxu0 0
        %945 = vmatpush1.bf16.msra.mxu0 0
        %946 = vmatprep.subr.bf16.mxu0 0
        %947 = vmatpush1.bf16.msra.mxu0 0
        %948 = vmatprep.subr.bf16.mxu0 0
        %949 = vmatpush1.bf16.msra.mxu0 0
        %950 = vmatprep.subr.bf16.mxu0 0
        %951 = vmatpush1.bf16.msra.mxu0 0
        %952 = vmatprep.subr.bf16.mxu0 0
        %953 = vmatpush1.bf16.msra.mxu0 0
        %954 = vmatprep.subr.bf16.mxu0 0
        %955 = vmatpush1.bf16.msra.mxu0 0
        %956 = vmatprep.subr.bf16.mxu0 0
        %957 = vmatpush1.bf16.msra.mxu0 0
        %958 = vmatprep.subr.bf16.mxu0 0
        %959 = vmatpush1.bf16.msra.mxu0 0
        %960 = vmatprep.subr.bf16.mxu0 0
        %961 = vmatpush1.bf16.msra.mxu0 0
        %962 = vmatprep.subr.bf16.mxu0 0
        %963 = vmatpush1.bf16.msra.mxu0 0
        %964 = vmatprep.subr.bf16.mxu0 0
        %965 = vmatpush1.bf16.msra.mxu0 0
        %966 = vmatprep.subr.bf16.mxu0 0
        %967 = vmatpush1.bf16.msra.mxu0 0
        %968 = vmatprep.subr.bf16.mxu0 0
        %969 = vmatpush1.bf16.msra.mxu0 0
        %970 = vmatprep.mubr.bf16.mxu0 0
        %971 = vmatmul.mubr.bf16.gmra.mrb[0].mxu0 %v936
        %v972 = vpop.f32.mrb[0].mxu0
        %v973 = vadd.f32 %v921, %v972
        %v974 = vpop.f32.mrb[0].mxu0
        %v975 = vpop.f32.mrb[0].mxu0
        %v976 = vpop.f32.mrb[0].mxu0
        %977 = vdwg.mxu0
        %v978 = vpack.c.bf16 %v973, %v973
        %vm979 = vcmask 64512
        %980 = vst.msk [vmem:[#allocation2] sm:$0xff] %vm979, %v910
        %982 = vrot.lane.b32.xlu0 %v910, 96
        %v983 = vpop.permute.xlu0 %982
        %985 = vst.msk [vmem:[#allocation4] sm:$0xff] %vm979, %v983
        %vm986 = vcmask 60416
        %987 = vst.msk [vmem:[#allocation3] sm:$0xf] %vm986, %v978
        %v989 = vunpack.c.l.b16 %v978
        %v990 = vpack.c.b16 %v989, %v989
        %991 = vrot.lane.b32.xlu0 %v990, 96
        %v992 = vpop.permute.xlu0 %991
        %994 = vst.msk [vmem:[#allocation5] sm:$0xf] %vm986, %v992
        %995 = vrot.lane.b32.xlu0 %v910, 120
        %v996 = vpop.permute.xlu0 %995
        %s998 = scalar_lea.vmem [#allocation2], 8
        %999 = vst.msk [vmem:[%s998] sm:$0xff] %vm979, %v996
        %1000 = vrot.lane.b32.xlu0 %v910, 88
        %v1001 = vpop.permute.xlu0 %1000
        %s1003 = scalar_lea.vmem [#allocation4], 8
        %1004 = vst.msk [vmem:[%s1003] sm:$0xff] %vm979, %v1001
        %1005 = vrot.lane.b32.xlu0 %v990, 120
        %v1006 = vpop.permute.xlu0 %1005
        %s1008 = scalar_lea.vmem [#allocation3], 4
        %1009 = vst.msk [vmem:[%s1008] sm:$0xf] %vm986, %v1006
        %1010 = vrot.lane.b32.xlu0 %v990, 88
        %v1011 = vpop.permute.xlu0 %1010
        %s1013 = scalar_lea.vmem [#allocation5], 4
        %1014 = vst.msk [vmem:[%s1013] sm:$0xf] %vm986, %v1011
        %1015 = vrot.lane.b32.xlu0 %v910, 112
        %v1016 = vpop.permute.xlu0 %1015
        %s1018 = scalar_lea.vmem [#allocation2], 16
        %1019 = vst.msk [vmem:[%s1018] sm:$0xff] %vm979, %v1016
        %1020 = vrot.lane.b32.xlu0 %v910, 80
        %v1021 = vpop.permute.xlu0 %1020
        %s1023 = scalar_lea.vmem [#allocation4], 16
        %1024 = vst.msk [vmem:[%s1023] sm:$0xff] %vm979, %v1021
        %1025 = vrot.lane.b32.xlu0 %v990, 112
        %v1026 = vpop.permute.xlu0 %1025
        %s1028 = scalar_lea.vmem [#allocation3], 8
        %1029 = vst.msk [vmem:[%s1028] sm:$0xf] %vm986, %v1026
        %1030 = vrot.lane.b32.xlu0 %v990, 80
        %v1031 = vpop.permute.xlu0 %1030
        %s1033 = scalar_lea.vmem [#allocation5], 8
        %1034 = vst.msk [vmem:[%s1033] sm:$0xf] %vm986, %v1031
        %1035 = vrot.lane.b32.xlu0 %v910, 104
        %v1036 = vpop.permute.xlu0 %1035
        %s1038 = scalar_lea.vmem [#allocation2], 24
        %1039 = vst.msk [vmem:[%s1038] sm:$0xff] %vm979, %v1036
        %1040 = vrot.lane.b32.xlu0 %v910, 72
        %v1041 = vpop.permute.xlu0 %1040
        %s1043 = scalar_lea.vmem [#allocation4], 24
        %1044 = vst.msk [vmem:[%s1043] sm:$0xff] %vm979, %v1041
        %1045 = vrot.lane.b32.xlu0 %v990, 104
        %v1046 = vpop.permute.xlu0 %1045
        %s1048 = scalar_lea.vmem [#allocation3], 12
        %1049 = vst.msk [vmem:[%s1048] sm:$0xf] %vm986, %v1046
        %1050 = vrot.lane.b32.xlu0 %v990, 72
        %v1051 = vpop.permute.xlu0 %1050
        %s1053 = scalar_lea.vmem [#allocation5], 12
        %1054 = vst.msk [vmem:[%s1053] sm:$0xf] %vm986, %v1051
        %v1055 = vld [vmem:[%s668] sm:$0x1]
        %vm1056 = vcmp.eq.f32.partialorder %v1055, 0.0
        %v1057 = vsel %vm1056, -9e+15, %v1055
        loop: start=0, step=1, limit=4
        $region129: #{tpu_custom_call.1} parent=87 // loop_pre_header
          _
        $region130: #{tpu_custom_call.1} parent=87 // loop_header
          %s1059 = sphi 0, %s1063
          %p1060 = scmp.ge.s32.totalorder %s1059, 4
        $region131: #{tpu_custom_call.1} parent=87 // loop_header_branch
          %1062 = sbr.rel (%p1060) target = $region135
        $region132: #{tpu_custom_call.1} parent=87 // loop_body
          %s1064 = smul.addr %s1059, 8
          %s1065 = scalar_lea.vmem [#allocation2], %s1064
          %v1066 = vld [vmem:[%s1065] sm:$0xff]
          %s1067 = smul.addr %s1059, 4
          %s1068 = scalar_lea.vmem [#allocation3], %s1067
          %v1069 = vld [vmem:[%s1068] sm:$0xf]
          %v1071 = vsel %vm979, %v1066, 0
          %v1074 = vsel %vm979, %v1069, 0
          %1076 = vmatprep.subr.bf16.mxu0 0
          %1077 = vmatpush1.bf16.xpose.msra.mxu0 %v1074
          %1078 = vmatprep.subr.bf16.mxu0 0
          %1079 = vmatpush1.bf16.xpose.msra.mxu0 0
          %1080 = vmatprep.subr.bf16.mxu0 0
          %1081 = vmatpush1.bf16.xpose.msra.mxu0 0
          %1082 = vmatprep.subr.bf16.mxu0 0
          %1083 = vmatpush1.bf16.xpose.msra.mxu0 0
          %1084 = vmatprep.subr.bf16.mxu0 0
          %1085 = vmatpush1.bf16.xpose.msra.mxu0 0
          %1086 = vmatprep.subr.bf16.mxu0 0
          %1087 = vmatpush1.bf16.xpose.msra.mxu0 0
          %1088 = vmatprep.subr.bf16.mxu0 0
          %1089 = vmatpush1.bf16.xpose.msra.mxu0 0
          %1090 = vmatprep.subr.bf16.mxu0 0
          %1091 = vmatpush1.bf16.xpose.msra.mxu0 0
          %1092 = vmatprep.subr.bf16.mxu0 0
          %1093 = vmatpush1.bf16.xpose.msra.mxu0 0
          %1094 = vmatprep.subr.bf16.mxu0 0
          %1095 = vmatpush1.bf16.xpose.msra.mxu0 0
          %1096 = vmatprep.subr.bf16.mxu0 0
          %1097 = vmatpush1.bf16.xpose.msra.mxu0 0
          %1098 = vmatprep.subr.bf16.mxu0 0
          %1099 = vmatpush1.bf16.xpose.msra.mxu0 0
          %1100 = vmatprep.subr.bf16.mxu0 0
          %1101 = vmatpush1.bf16.xpose.msra.mxu0 0
          %1102 = vmatprep.subr.bf16.mxu0 0
          %1103 = vmatpush1.bf16.xpose.msra.mxu0 0
          %1104 = vmatprep.subr.bf16.mxu0 0
          %1105 = vmatpush1.bf16.xpose.msra.mxu0 0
          %1106 = vmatprep.subr.bf16.mxu0 0
          %1107 = vmatpush1.bf16.xpose.msra.mxu0 0
          %1108 = vmatprep.mubr.bf16.mxu0 0
          %1109 = vmatmul.mubr.bf16.gmra.mrb[0].mxu0 %v1071
          %v1110 = vpop.f32.mrb[0].mxu0
          %v1111 = vadd.f32 0.0, %v1110
          %v1112 = vpop.f32.mrb[0].mxu0
          %v1113 = vpop.f32.mrb[0].mxu0
          %v1114 = vadd.f32 0.0, %v1113
          %v1115 = vpop.f32.mrb[0].mxu0
          %1116 = vdwg.mxu0
          %v1117 = vmax.f32 %v1111, -50000.0
          %v1118 = vmax.f32 %v1114, -50000.0
          %v1119 = vmin.f32 %v1117, 50000.0
          %v1120 = vmin.f32 %v1118, 50000.0
          %v1122 = vlaneseq
          %v1123 = vshrl.u32 %v1122, 7
          %v1124 = vsub.s32 0, %v1123
          %v1125 = vrot.slane %v1057, %v1124
          %v1127 = vadd.f32 %v1119, %v1125
          %v1128 = vadd.f32 %v1120, %v1125
          %v1129 = vsel %vm979, %v1127, -inf
          %1130 = vmax.xlane.f32.xlu0 %v1129
          %v1131 = vpop.xlane.xlu0 %1130
          %v1132 = vsel %vm979, %v1128, -inf
          %1133 = vmax.xlane.f32.xlu0 %v1132
          %v1134 = vpop.xlane.xlu0 %1133
          %v1135 = vsub.f32 %v1127, %v1131
          %v1136 = vsub.f32 %v1128, %v1134
          %v1137 = vmul.f32 %v1135, 1.442695
          %v1138 = vpow.pop %v1137
          %v1139 = vmul.f32 %v1136, 1.442695
          %v1140 = vpow.pop %v1139
          %v1141 = vsel %vm979, %v1138, 0.0
          %1142 = vadd.xlane.f32.xlu0 %v1141
          %v1143 = vpop.xlane.xlu0 %1142
          %v1144 = vsel %vm979, %v1140, 0.0
          %1145 = vadd.xlane.f32.xlu0 %v1144
          %v1146 = vpop.xlane.xlu0 %1145
          %v1147 = vrcp.pop %v1143
          %v1148 = vrcp.pop %v1146
          %v1149 = vmul.f32 %v1138, %v1147
          %v1150 = vmul.f32 %v1140, %v1148
          %1151 = vxpose.xlu0.b32.start [1/16] %v1119, 128
          %1152 = vxpose.xlu0.b32.cont [2/16] %v1120, 128
          %1153 = vxpose.xlu0.b32.cont [3/16] 0.0, 128
          %1154 = vxpose.xlu0.b32.cont [4/16] 0.0, 128
          %1155 = vxpose.xlu0.b32.cont [5/16] 0.0, 128
          %1156 = vxpose.xlu0.b32.cont [6/16] 0.0, 128
          %1157 = vxpose.xlu0.b32.cont [7/16] 0.0, 128
          %1158 = vxpose.xlu0.b32.cont [8/16] 0.0, 128
          %1159 = vxpose.xlu0.b32.cont [9/16] 0.0, 128
          %1160 = vxpose.xlu0.b32.cont [10/16] 0.0, 128
          %1161 = vxpose.xlu0.b32.cont [11/16] 0.0, 128
          %1162 = vxpose.xlu0.b32.cont [12/16] 0.0, 128
          %1163 = vxpose.xlu0.b32.cont [13/16] 0.0, 128
          %1164 = vxpose.xlu0.b32.cont [14/16] 0.0, 128
          %1165 = vxpose.xlu0.b32.cont [15/16] 0.0, 128
          %1166 = vxpose.xlu0.b32.end [16/16] 0.0, 128
          %v1167 = vpop.trf.xlu0
          %v1168 = vpop.trf.xlu0
          %v1169 = vpop.trf.xlu0
          %v1170 = vpop.trf.xlu0
          %v1171 = vpop.trf.xlu0
          %v1172 = vpop.trf.xlu0
          %v1173 = vpop.trf.xlu0
          %v1174 = vpop.trf.xlu0
          %v1175 = vpop.trf.xlu0
          %v1176 = vpop.trf.xlu0
          %v1177 = vpop.trf.xlu0
          %v1178 = vpop.trf.xlu0
          %v1179 = vpop.trf.xlu0
          %v1180 = vpop.trf.xlu0
          %v1181 = vpop.trf.xlu0
          %v1182 = vpop.trf.xlu0
          %vm1183 = vcmask 130048
          %v1184 = vsel %vm1183, %v1167, -inf
          %1185 = vmax.xlane.f32.xlu0 %v1184
          %v1186 = vpop.xlane.xlu0 %1185
          %v1187 = vsub.f32 %v1167, %v1186
          %v1188 = vmul.f32 %v1187, 1.442695
          %v1189 = vpow.pop %v1188
          %v1190 = vsel %vm1183, %v1189, 0.0
          %1191 = vadd.xlane.f32.xlu0 %v1190
          %v1192 = vpop.xlane.xlu0 %1191
          %v1193 = vrcp.pop %v1192
          %v1194 = vmul.f32 %v1189, %v1193
          %v1195 = vpack.c.bf16 %v1150, %v1149
          %s1196 = smul.addr %s1059, 4
          %s1197 = scalar_lea.vmem [#allocation5], %s1196
          %v1198 = vld [vmem:[%s1197] sm:$0xf]
          %v1200 = vsel %vm979, %v1195, 0
          %vm1202 = vcmask 1043456
          %v1204 = vsel %vm1202, %v1198, 0
          %1206 = vmatprep.subr.bf16.mxu0 0
          %1207 = vmatpush1.bf16.msra.mxu0 %v1204
          %1208 = vmatprep.subr.bf16.mxu0 0
          %1209 = vmatpush1.bf16.msra.mxu0 0
          %1210 = vmatprep.subr.bf16.mxu0 0
          %1211 = vmatpush1.bf16.msra.mxu0 0
          %1212 = vmatprep.subr.bf16.mxu0 0
          %1213 = vmatpush1.bf16.msra.mxu0 0
          %1214 = vmatprep.subr.bf16.mxu0 0
          %1215 = vmatpush1.bf16.msra.mxu0 0
          %1216 = vmatprep.subr.bf16.mxu0 0
          %1217 = vmatpush1.bf16.msra.mxu0 0
          %1218 = vmatprep.subr.bf16.mxu0 0
          %1219 = vmatpush1.bf16.msra.mxu0 0
          %1220 = vmatprep.subr.bf16.mxu0 0
          %1221 = vmatpush1.bf16.msra.mxu0 0
          %1222 = vmatprep.subr.bf16.mxu0 0
          %1223 = vmatpush1.bf16.msra.mxu0 0
          %1224 = vmatprep.subr.bf16.mxu0 0
          %1225 = vmatpush1.bf16.msra.mxu0 0
          %1226 = vmatprep.subr.bf16.mxu0 0
          %1227 = vmatpush1.bf16.msra.mxu0 0
          %1228 = vmatprep.subr.bf16.mxu0 0
          %1229 = vmatpush1.bf16.msra.mxu0 0
          %1230 = vmatprep.subr.bf16.mxu0 0
          %1231 = vmatpush1.bf16.msra.mxu0 0
          %1232 = vmatprep.subr.bf16.mxu0 0
          %1233 = vmatpush1.bf16.msra.mxu0 0
          %1234 = vmatprep.subr.bf16.mxu0 0
          %1235 = vmatpush1.bf16.msra.mxu0 0
          %1236 = vmatprep.subr.bf16.mxu0 0
          %1237 = vmatpush1.bf16.msra.mxu0 0
          %1238 = vmatprep.mubr.bf16.mxu0 0
          %1239 = vmatmul.mubr.bf16.gmra.mrb[0].mxu0 %v1200
          %v1240 = vpop.f32.mrb[0].mxu0
          %v1241 = vadd.f32 0.0, %v1240
          %v1242 = vpop.f32.mrb[0].mxu0
          %v1243 = vpop.f32.mrb[0].mxu0
          %v1244 = vadd.f32 0.0, %v1243
          %v1245 = vpop.f32.mrb[0].mxu0
          %1246 = vdwg.mxu0
          %s1247 = smul.u32 %s1059, 16
          %s1248 = scalar_lea.vmem [#allocation6], %s1247
          %1249 = vst.msk [vmem:[%s1248] sm:$0xff] %vm979, %v1241
          %1250 = vst.msk [vmem:[%s1248 + $0x8] sm:$0xff] %vm979, %v1244
          %v1251 = vpack.c.bf16 %v1194, %v1194
          %s1252 = smul.addr %s1059, 8
          %s1253 = scalar_lea.vmem [#allocation4], %s1252
          %v1254 = vld [vmem:[%s1253] sm:$0xff]
          %v1256 = vsel %vm1183, %v1251, 0
          %1258 = vmatprep.subr.bf16.mxu0 0
          %1259 = vmatpush1.bf16.msra.mxu0 %v1254
          %1260 = vmatprep.subr.bf16.mxu0 0
          %1261 = vmatpush1.bf16.msra.mxu0 0
          %1262 = vmatprep.subr.bf16.mxu0 0
          %1263 = vmatpush1.bf16.msra.mxu0 0
          %1264 = vmatprep.subr.bf16.mxu0 0
          %1265 = vmatpush1.bf16.msra.mxu0 0
          %1266 = vmatprep.subr.bf16.mxu0 0
          %1267 = vmatpush1.bf16.msra.mxu0 0
          %1268 = vmatprep.subr.bf16.mxu0 0
          %1269 = vmatpush1.bf16.msra.mxu0 0
          %1270 = vmatprep.subr.bf16.mxu0 0
          %1271 = vmatpush1.bf16.msra.mxu0 0
          %1272 = vmatprep.subr.bf16.mxu0 0
          %1273 = vmatpush1.bf16.msra.mxu0 0
          %1274 = vmatprep.subr.bf16.mxu0 0
          %1275 = vmatpush1.bf16.msra.mxu0 0
          %1276 = vmatprep.subr.bf16.mxu0 0
          %1277 = vmatpush1.bf16.msra.mxu0 0
          %1278 = vmatprep.subr.bf16.mxu0 0
          %1279 = vmatpush1.bf16.msra.mxu0 0
          %1280 = vmatprep.subr.bf16.mxu0 0
          %1281 = vmatpush1.bf16.msra.mxu0 0
          %1282 = vmatprep.subr.bf16.mxu0 0
          %1283 = vmatpush1.bf16.msra.mxu0 0
          %1284 = vmatprep.subr.bf16.mxu0 0
          %1285 = vmatpush1.bf16.msra.mxu0 0
          %1286 = vmatprep.subr.bf16.mxu0 0
          %1287 = vmatpush1.bf16.msra.mxu0 0
          %1288 = vmatprep.subr.bf16.mxu0 0
          %1289 = vmatpush1.bf16.msra.mxu0 0
          %1290 = vmatprep.mubr.bf16.mxu0 0
          %1291 = vmatmul.mubr.bf16.gmra.mrb[0].mxu0 %v1256
          %v1292 = vpop.f32.mrb[0].mxu0
          %v1293 = vadd.f32 0.0, %v1292
          %v1294 = vpop.f32.mrb[0].mxu0
          %v1295 = vpop.f32.mrb[0].mxu0
          %v1296 = vpop.f32.mrb[0].mxu0
          %1297 = vdwg.mxu0
          %s1298 = smul.u32 %s1059, 8
          %s1299 = scalar_lea.vmem [#allocation7], %s1298
          %1300 = vst.msk [vmem:[%s1299] sm:$0xff] %vm979, %v1293
        $region133: #{tpu_custom_call.1} parent=87 // loop_footer
          %s1063 = sadd.s32 1, %s1059
        $region134: #{tpu_custom_call.1} parent=87 // loop_footer_branch
          %1058 = sbr.rel target = $region130
        $region135: #{tpu_custom_call.1} parent=87 // loop_exit
          _
        %v1301 = vld [vmem:[#allocation6] sm:$0xff]
        %v1302 = vld [vmem:[#allocation6 + $0x8] sm:$0xff]
        %1303 = vst.msk [vmem:[#allocation8] sm:$0xff] %vm979, %v1301
        %1304 = vst.msk [vmem:[#allocation8 + $0x8] sm:$0xff] %vm979, %v1302
        %v1305 = vld [vmem:[#allocation7] sm:$0xff]
        %1306 = vst.msk [vmem:[#allocation9] sm:$0xff] %vm979, %v1305
        %s1307 = scalar_lea.vmem [#allocation6], 16
        %v1308 = vld [vmem:[%s1307] sm:$0xff]
        %v1309 = vld [vmem:[%s1307 + $0x8] sm:$0xff]
        %1312 = vrot.lane.b32.xlu0 %v1308, 8
        %v1313 = vpop.permute.xlu0 %1312
        %1314 = vrot.lane.b32.xlu0 %v1309, 8
        %v1315 = vpop.permute.xlu0 %1314
        %vm1318 = vcmask 130112
        %1319 = vst.msk [vmem:[#allocation8] sm:$0xff] %vm1318, %v1313
        %1320 = vst.msk [vmem:[#allocation8 + $0x8] sm:$0xff] %vm1318, %v1315
        %s1321 = scalar_lea.vmem [#allocation7], 8
        %v1322 = vld [vmem:[%s1321] sm:$0xff]
        %1324 = vrot.lane.b32.xlu0 %v1322, 8
        %v1325 = vpop.permute.xlu0 %1324
        %1327 = vst.msk [vmem:[#allocation9] sm:$0xff] %vm1318, %v1325
        %s1328 = scalar_lea.vmem [#allocation6], 32
        %v1329 = vld [vmem:[%s1328] sm:$0xff]
        %v1330 = vld [vmem:[%s1328 + $0x8] sm:$0xff]
        %1333 = vrot.lane.b32.xlu0 %v1329, 16
        %v1334 = vpop.permute.xlu0 %1333
        %1335 = vrot.lane.b32.xlu0 %v1330, 16
        %v1336 = vpop.permute.xlu0 %1335
        %vm1339 = vcmask 195712
        %1340 = vst.msk [vmem:[#allocation8] sm:$0xff] %vm1339, %v1334
        %1341 = vst.msk [vmem:[#allocation8 + $0x8] sm:$0xff] %vm1339, %v1336
        %s1342 = scalar_lea.vmem [#allocation7], 16
        %v1343 = vld [vmem:[%s1342] sm:$0xff]
        %1345 = vrot.lane.b32.xlu0 %v1343, 16
        %v1346 = vpop.permute.xlu0 %1345
        %1348 = vst.msk [vmem:[#allocation9] sm:$0xff] %vm1339, %v1346
        %s1349 = scalar_lea.vmem [#allocation6], 48
        %v1350 = vld [vmem:[%s1349] sm:$0xff]
        %v1351 = vld [vmem:[%s1349 + $0x8] sm:$0xff]
        %1354 = vrot.lane.b32.xlu0 %v1350, 24
        %v1355 = vpop.permute.xlu0 %1354
        %1356 = vrot.lane.b32.xlu0 %v1351, 24
        %v1357 = vpop.permute.xlu0 %1356
        %vm1360 = vcmask 261312
        %1361 = vst.msk [vmem:[#allocation8] sm:$0xff] %vm1360, %v1355
        %1362 = vst.msk [vmem:[#allocation8 + $0x8] sm:$0xff] %vm1360, %v1357
        %s1363 = scalar_lea.vmem [#allocation7], 24
        %v1364 = vld [vmem:[%s1363] sm:$0xff]
        %1366 = vrot.lane.b32.xlu0 %v1364, 24
        %v1367 = vpop.permute.xlu0 %1366
        %1369 = vst.msk [vmem:[#allocation9] sm:$0xff] %vm1360, %v1367
        %v1370 = vld [vmem:[#allocation8] sm:$0xff]
        %v1371 = vld [vmem:[#allocation8 + $0x8] sm:$0xff]
        %v1372 = vpack.c.bf16 %v1371, %v1370
        %v1373 = vld [vmem:[#allocation24] sm:$0xf]
        %v1374 = vld [vmem:[#allocation24 + $0x4] sm:$0xf]
        %v1375 = vld [vmem:[#allocation24 + $0x8] sm:$0xf]
        %v1376 = vld [vmem:[#allocation24 + $0xc] sm:$0xf]
        %v1377 = vld [vmem:[#allocation25] sm:$0x1]
        %v1379 = vlaneseq
        %v1380 = vshrl.u32 %v1379, 7
        %v1381 = vsub.s32 0, %v1380
        %v1382 = vrot.slane %v1377, %v1381
        %v1388 = vunpack.c.l.b16 %v1373
        %v1389 = vunpack.c.l.b16 %v1374
        %v1390 = vunpack.c.l.b16 %v1375
        %v1391 = vunpack.c.l.b16 %v1376
        %v1392 = vpack.c.b16 %v1389, %v1388
        %v1393 = vpack.c.b16 %v1391, %v1390
        %v1397 = vsel %vm769, %v1372, 0
        %1399 = vmatprep.subr.bf16.mxu0 0
        %1400 = vmatpush1.bf16.msra.mxu0 %v1392
        %1401 = vmatprep.subr.bf16.mxu0 0
        %1402 = vmatpush1.bf16.msra.mxu0 %v1393
        %1403 = vmatprep.subr.bf16.mxu0 0
        %1404 = vmatpush1.bf16.msra.mxu0 0
        %1405 = vmatprep.subr.bf16.mxu0 0
        %1406 = vmatpush1.bf16.msra.mxu0 0
        %1407 = vmatprep.subr.bf16.mxu0 0
        %1408 = vmatpush1.bf16.msra.mxu0 0
        %1409 = vmatprep.subr.bf16.mxu0 0
        %1410 = vmatpush1.bf16.msra.mxu0 0
        %1411 = vmatprep.subr.bf16.mxu0 0
        %1412 = vmatpush1.bf16.msra.mxu0 0
        %1413 = vmatprep.subr.bf16.mxu0 0
        %1414 = vmatpush1.bf16.msra.mxu0 0
        %1415 = vmatprep.subr.bf16.mxu0 0
        %1416 = vmatpush1.bf16.msra.mxu0 0
        %1417 = vmatprep.subr.bf16.mxu0 0
        %1418 = vmatpush1.bf16.msra.mxu0 0
        %1419 = vmatprep.subr.bf16.mxu0 0
        %1420 = vmatpush1.bf16.msra.mxu0 0
        %1421 = vmatprep.subr.bf16.mxu0 0
        %1422 = vmatpush1.bf16.msra.mxu0 0
        %1423 = vmatprep.subr.bf16.mxu0 0
        %1424 = vmatpush1.bf16.msra.mxu0 0
        %1425 = vmatprep.subr.bf16.mxu0 0
        %1426 = vmatpush1.bf16.msra.mxu0 0
        %1427 = vmatprep.subr.bf16.mxu0 0
        %1428 = vmatpush1.bf16.msra.mxu0 0
        %1429 = vmatprep.subr.bf16.mxu0 0
        %1430 = vmatpush1.bf16.msra.mxu0 0
        %1431 = vmatprep.mubr.bf16.mxu0 0
        %1432 = vmatmul.mubr.bf16.gmra.mrb[0].mxu0 %v1397
        %v1433 = vpop.f32.mrb[0].mxu0
        %v1434 = vadd.f32 %v1382, %v1433
        %v1435 = vpop.f32.mrb[0].mxu0
        %v1436 = vpop.f32.mrb[0].mxu0
        %v1437 = vadd.f32 %v1382, %v1436
        %v1438 = vpop.f32.mrb[0].mxu0
        %1439 = vdwg.mxu0
        %v1440 = vld [vmem:[#allocation9] sm:$0xff]
        %v1441 = vpack.c.bf16 %v1440, %v1440
        %v1442 = vld [vmem:[%s13] sm:$0xf]
        %v1443 = vld [vmem:[%s13 + $0x4] sm:$0xf]
        %v1444 = vld [vmem:[%s13 + $0x8] sm:$0xf]
        %v1445 = vld [vmem:[%s13 + $0xc] sm:$0xf]
        %v1446 = vld [vmem:[%s14] sm:$0x1]
        %v1448 = vlaneseq
        %v1449 = vshrl.u32 %v1448, 7
        %v1450 = vsub.s32 0, %v1449
        %v1451 = vrot.slane %v1446, %v1450
        %v1457 = vunpack.c.l.b16 %v1442
        %v1458 = vunpack.c.l.b16 %v1443
        %v1459 = vunpack.c.l.b16 %v1444
        %v1460 = vunpack.c.l.b16 %v1445
        %v1461 = vpack.c.b16 %v1458, %v1457
        %v1462 = vpack.c.b16 %v1460, %v1459
        %v1466 = vsel %vm769, %v1441, 0
        %1468 = vmatprep.subr.bf16.mxu0 0
        %1469 = vmatpush1.bf16.msra.mxu0 %v1461
        %1470 = vmatprep.subr.bf16.mxu0 0
        %1471 = vmatpush1.bf16.msra.mxu0 %v1462
        %1472 = vmatprep.subr.bf16.mxu0 0
        %1473 = vmatpush1.bf16.msra.mxu0 0
        %1474 = vmatprep.subr.bf16.mxu0 0
        %1475 = vmatpush1.bf16.msra.mxu0 0
        %1476 = vmatprep.subr.bf16.mxu0 0
        %1477 = vmatpush1.bf16.msra.mxu0 0
        %1478 = vmatprep.subr.bf16.mxu0 0
        %1479 = vmatpush1.bf16.msra.mxu0 0
        %1480 = vmatprep.subr.bf16.mxu0 0
        %1481 = vmatpush1.bf16.msra.mxu0 0
        %1482 = vmatprep.subr.bf16.mxu0 0
        %1483 = vmatpush1.bf16.msra.mxu0 0
        %1484 = vmatprep.subr.bf16.mxu0 0
        %1485 = vmatpush1.bf16.msra.mxu0 0
        %1486 = vmatprep.subr.bf16.mxu0 0
        %1487 = vmatpush1.bf16.msra.mxu0 0
        %1488 = vmatprep.subr.bf16.mxu0 0
        %1489 = vmatpush1.bf16.msra.mxu0 0
        %1490 = vmatprep.subr.bf16.mxu0 0
        %1491 = vmatpush1.bf16.msra.mxu0 0
        %1492 = vmatprep.subr.bf16.mxu0 0
        %1493 = vmatpush1.bf16.msra.mxu0 0
        %1494 = vmatprep.subr.bf16.mxu0 0
        %1495 = vmatpush1.bf16.msra.mxu0 0
        %1496 = vmatprep.subr.bf16.mxu0 0
        %1497 = vmatpush1.bf16.msra.mxu0 0
        %1498 = vmatprep.subr.bf16.mxu0 0
        %1499 = vmatpush1.bf16.msra.mxu0 0
        %1500 = vmatprep.mubr.bf16.mxu0 0
        %1501 = vmatmul.mubr.bf16.gmra.mrb[0].mxu0 %v1466
        %v1502 = vpop.f32.mrb[0].mxu0
        %v1503 = vadd.f32 %v1451, %v1502
        %v1504 = vpop.f32.mrb[0].mxu0
        %v1505 = vpop.f32.mrb[0].mxu0
        %v1506 = vpop.f32.mrb[0].mxu0
        %1507 = vdwg.mxu0
        %v1508 = vld [vmem:[%s15] sm:$0x1]
        %v1510 = vlaneseq
        %v1511 = vshrl.u32 %v1510, 7
        %v1512 = vsub.s32 0, %v1511
        %v1513 = vrot.slane %v1508, %v1512
        %v1515 = vmul.f32 %v1513, %v1434
        %v1516 = vmul.f32 %v1513, %v1437
        %v1517 = vadd.f32 %v811, %v1515
        %v1518 = vadd.f32 %v812, %v1516
        %1519 = vst.msk [vmem:[%s755] sm:$0xff] %vm769, %v1517
        %1520 = vst.msk [vmem:[%s755 + $0x8] sm:$0xff] %vm769, %v1518
        %v1521 = vld [vmem:[%s16] sm:$0x1]
        %v1523 = vlaneseq
        %v1524 = vshrl.u32 %v1523, 7
        %v1525 = vsub.s32 0, %v1524
        %v1526 = vrot.slane %v1521, %v1525
        %v1528 = vmul.f32 %v1526, %v1503
        %v1529 = vadd.f32 %v841, %v1528
        %1530 = vst.msk [vmem:[%s762] sm:$0xff] %vm769, %v1529
        %s1531 = sand.u32 %s426, 1
        %s1532 = scalar_lea.sflag [#allocation12], %s1531
        %s1533 = sand.u32 %s426, 1
        %s1534 = smul.addr %s1533, 16
        %s1535 = scalar_lea.vmem [#allocation27], %s1534
        %s1536 = sand.u32 %s452, 1
        %s1537 = scalar_lea.sflag [#allocation29], %s1536
        %s1538 = sand.u32 %s452, 1
        %s1539 = smul.addr %s1538, 8
        %s1540 = scalar_lea.vmem [#allocation28], %s1539
        // Predicated region
        $region136: #{tpu_custom_call.1} parent=87 // pred_check
          %p1541 = pneg %p436
        $region137: #{tpu_custom_call.1} parent=87 // pred_check_branch
          %1543 = sbr.rel (%p1541) target = $region139
        $region138: #{tpu_custom_call.1} parent=87 // pred_region
          %s1545 = ssub.s32 256, 256
          %1546 = vsyncadd %s1532, %s1545
          %s1547 = smul.addr %s46, 2
          %s1548 = smul.addr %s1547, 128
          %s1549 = scalar_lea.hbm %s17, %s1548
          %s1550 = sshll.u32 %s1535, 4
          %s1551 = int_to_ptr.vmem [resolvable:$true] %s1550
          %1556 = dma.vmem_to_hbm [thread:$0]  %s1551, 256, %s1549, %s1532, 128, 128, 8
        $region139: #{tpu_custom_call.1} parent=87 // pred_fallthru
          _
        // Predicated region
        $region140: #{tpu_custom_call.1} parent=87 // pred_check
          %p1557 = pneg %p462
        $region141: #{tpu_custom_call.1} parent=87 // pred_check_branch
          %1559 = sbr.rel (%p1557) target = $region143
        $region142: #{tpu_custom_call.1} parent=87 // pred_region
          %s1561 = ssub.s32 128, 128
          %1562 = vsyncadd %s1537, %s1561
          %s1563 = smul.addr %s46, 128
          %s1564 = scalar_lea.hbm %s18, %s1563
          %s1566 = sshll.u32 %s1540, 4
          %s1567 = int_to_ptr.vmem [resolvable:$true] %s1566
          %1569 = dma.vmem_to_hbm [thread:$0]  %s1567, 128, %s1564, %s1537
        $region143: #{tpu_custom_call.1} parent=87 // pred_fallthru
          _
      $region88: #{tpu_custom_call.1} parent=5 // pred_fallthru
        _
      %p1570 = scmp.le.s32.totalorder 2, %s41
      // Predicated region
      $region144: #{tpu_custom_call.1} parent=5 // pred_check
        %p1571 = pneg %p1570
      $region145: #{tpu_custom_call.1} parent=5 // pred_check_branch
        %1573 = sbr.rel (%p1571) target = $region147
      $region146: #{tpu_custom_call.1} parent=5 // pred_region
        %s1574 = ssub.s32 %s41, 2
        // Predicated region
        $region148: #{tpu_custom_call.1} parent=146 // pred_check
          %p1575 = pneg %p442
        $region149: #{tpu_custom_call.1} parent=146 // pred_check_branch
          %1577 = sbr.rel (%p1575) target = $region151
        $region150: #{tpu_custom_call.1} parent=146 // pred_region
          %s1578 = sand.u32 %s427, 1
          %s1579 = scalar_lea.sflag [#allocation12], %s1578
          %s1580 = sand.u32 %s427, 1
          %s1581 = smul.addr %s1580, 16
          %s1582 = scalar_lea.vmem [#allocation27], %s1581
          %1583 = dma.done %s1579, 256
        $region151: #{tpu_custom_call.1} parent=146 // pred_fallthru
          _
        // Predicated region
        $region152: #{tpu_custom_call.1} parent=146 // pred_check
          %p1584 = pneg %p468
        $region153: #{tpu_custom_call.1} parent=146 // pred_check_branch
          %1586 = sbr.rel (%p1584) target = $region155
        $region154: #{tpu_custom_call.1} parent=146 // pred_region
          %s1587 = sand.u32 %s453, 1
          %s1588 = scalar_lea.sflag [#allocation29], %s1587
          %s1589 = sand.u32 %s453, 1
          %s1590 = smul.addr %s1589, 8
          %s1591 = scalar_lea.vmem [#allocation28], %s1590
          %1592 = dma.done %s1588, 128
        $region155: #{tpu_custom_call.1} parent=146 // pred_fallthru
          _
      $region147: #{tpu_custom_call.1} parent=5 // pred_fallthru
        _
    $region6: #{tpu_custom_call.1} parent=1 // loop_footer
      %s45 = sadd.s32 1, %s41
    $region7: #{tpu_custom_call.1} parent=1 // loop_footer_branch
      %40 = sbr.rel target = $region3
    $region8: #{tpu_custom_call.1} parent=1 // loop_exit
      _
    %1593 = vsyncpa [#allocation11], 1
    %s1594 = scalar_lea.sflag [#allocation11], 1
    %1595 = vsyncpa %s1594, 1
    %1596 = vsyncpa [#allocation14], 1
    %s1597 = scalar_lea.sflag [#allocation14], 1
    %1598 = vsyncpa %s1597, 1
    %1599 = vsyncpa [#allocation17], 1
    %1600 = vsyncpa [#allocation20], 1
    %1601 = vsyncpa [#allocation23], 1
    %1602 = vsyncpa [#allocation26], 1
    %1603 = vsyncpa [#allocation12], 1
    %s1604 = scalar_lea.sflag [#allocation12], 1
    %1605 = vsyncpa %s1604, 1
    %1606 = vsyncpa [#allocation29], 1
    %s1607 = scalar_lea.sflag [#allocation29], 1
    %1608 = vsyncpa %s1607, 1

</llo_original>
